<compile_context>
chip_gen: v7x
topology: tpu7x:2x2x1
jax: 0.10.0
libtpu: 0.0.40
codegen_flags: <defaults>
</compile_context>

<pallas_src>
import numpy as np
import jax
import jax.numpy as jnp
from jax import lax
from jax.experimental import pallas as pl
from jax.experimental.pallas import tpu as pltpu

# ---- ShuffleUnit(in_channels=24, out_channels=24, groups=3, grouped_conv=True, combine='add') ----
N, H, W = 2, 16, 16
HW = H * W
NHW = N * HW
GROUPS = 3
C_IN = 24
C_OUT = 24              # combine='add' keeps out_channels
C_B = C_OUT // 4        # bottleneck channels = 6
EPS = 1e-5


# ----------------------------- Pallas kernel -----------------------------
def _bn_train(y, gamma, beta, invn_col):
    """Training-mode BatchNorm folded to one per-channel FMA (channel axis = rows).

    Moments go through the MXU (matmul with a 1/NHW column) instead of XLU
    cross-lane reduce trees, keeping the XLU free for the stencil rolls.
    """
    mu = jnp.dot(y, invn_col, preferred_element_type=jnp.float32)      # (C, 1)  E[y]
    ms = jnp.dot(y * y, invn_col, preferred_element_type=jnp.float32)  # (C, 1)  E[y^2]
    var = jnp.maximum(ms - mu * mu, 0.0)       # clamp E[x^2]-E[x]^2 cancellation
    scale = gamma * lax.rsqrt(var + EPS)       # rsqrt -> EUP (free slot)
    shift = beta - mu * scale
    return y * scale + shift


def shuffle_unit_kernel(x_ref, invn_ref, w1_ref, g1_ref, be1_ref,
                        mw_ref, g2_ref, be2_ref,
                        w3_ref, g3_ref, be3_ref, o_ref):
    n, _, hw = x_ref.shape
    nhw = n * hw
    invn_col = invn_ref[...]                                           # (NHW, 1) = 1/NHW

    # ---- gather input to channel-major (C_IN, N*H*W); lane-aligned concat (hw % 128 == 0) ----
    xc = jnp.concatenate([x_ref[i] for i in range(n)], axis=1)         # (24, 512)

    # ---- grouped 1x1 compress conv (block-diag matmul, channel_shuffle folded into rows) ----
    # conv bias dropped: it cancels exactly in the training-mode BN mean subtraction
    y = jnp.dot(w1_ref[...], xc, preferred_element_type=jnp.float32)   # (6, 512)
    y = _bn_train(y, g1_ref[...], be1_ref[...], invn_col)
    y = jnp.maximum(y, 0.0)

    # ---- depthwise 3x3, stride 1, pad 1: SEPARABLE stencil (4 rolls total) ----
    # boundary / wrap-around masks are pre-folded into mw (per-tap weight planes)
    xl = pltpu.roll(y, 1, 1)                   # xl[j] = y[j-1]
    xr = pltpu.roll(y, nhw - 1, 1)             # xr[j] = y[j+1]
    row_t = mw_ref[0] * xl + mw_ref[1] * y + mw_ref[2] * xr            # kh=0 (top taps)
    row_m = mw_ref[3] * xl + mw_ref[4] * y + mw_ref[5] * xr            # kh=1 (middle taps)
    row_b = mw_ref[6] * xl + mw_ref[7] * y + mw_ref[8] * xr            # kh=2 (bottom taps)
    z = pltpu.roll(row_t, W, 1) + row_m + pltpu.roll(row_b, nhw - W, 1)
    z = _bn_train(z, g2_ref[...], be2_ref[...], invn_col)

    # ---- grouped 1x1 expand conv (block-diag matmul) + BN ----
    o = jnp.dot(w3_ref[...], z, preferred_element_type=jnp.float32)    # (24, 512)
    o = _bn_train(o, g3_ref[...], be3_ref[...], invn_col)

    # ---- residual add (combine='add') fused into lane-aligned scatter back to (N, C, H*W) ----
    for i in range(n):
        o_ref[i] = o[:, i * hw:(i + 1) * hw] + x_ref[i]


def shuffle_unit_pallas(x_nchw, kp):
    n, c, h, w = x_nchw.shape
    hw = h * w
    nhw = n * hw
    x_flat = x_nchw.reshape(n, c, hw)          # free reshape; NCHW stays in place
    vmem = pl.BlockSpec(memory_space=pltpu.MemorySpace.VMEM)

    flops = (2 * C_B * C_IN * nhw              # compress 1x1
             + 2 * C_OUT * C_B * nhw           # expand 1x1
             + 18 * C_B * nhw                  # depthwise 3x3 (9 taps, mul+add)
             + 4 * (2 * C_B + C_OUT) * nhw     # BN moment matmuls
             + 8 * (2 * C_B + C_OUT) * nhw)    # BN apply / relu / residual (approx)
    param_bytes = 4 * sum(int(np.prod(v.shape)) for v in kp.values())
    bytes_accessed = 4 * (x_flat.size + n * C_OUT * hw) + param_bytes
    cost = pl.CostEstimate(flops=int(flops),
                           transcendentals=2 * C_B + C_OUT,   # 3 per-channel rsqrt
                           bytes_accessed=int(bytes_accessed))

    # Single invocation (no grid): at this toy size a grid axis would be pure per-step
    # overhead; for realistic ShuffleNet sizes add a leading "parallel" grid axis over
    # batch / lane-dense spatial chunks (two-pass BN stats), sized for v7x's 64 MiB VMEM.
    out = pl.pallas_call(
        shuffle_unit_kernel,
        out_shape=jax.ShapeDtypeStruct((n, C_OUT, hw), jnp.float32),
        in_specs=[vmem] * 11,
        out_specs=vmem,
        cost_estimate=cost,
    )(x_flat, kp['invn'], kp['w1'], kp['g1'], kp['be1'], kp['mw'],
      kp['g2'], kp['be2'], kp['w3'], kp['g3'], kp['be3'])
    return out.reshape(n, C_OUT, h, w)


# ----------------------------- parameter glue -----------------------------
def block_diag_1x1(w_pt, in_ch, out_ch, groups):
    """Grouped 1x1 conv weight (out_ch, in_ch//groups) -> block-diagonal (in_ch, out_ch)."""
    in_pg, out_pg = in_ch // groups, out_ch // groups
    Wm = np.zeros((in_ch, out_ch), np.float32)
    w_np = np.asarray(w_pt)
    for o in range(out_ch):
        g = o // out_pg
        Wm[g * in_pg:(g + 1) * in_pg, o] = w_np[o]
    return Wm


def make_tap_planes(wd_pt):
    """Per-tap depthwise weights with boundary masks folded in: (9, C_B, NHW).

    The 3x3 stencil is evaluated separably (horizontal rolls first, then vertical
    rolls of per-kh row sums).  The 9-tap validity mask factors exactly into a
    W-validity mask (column-invariant under the vertical roll) and a pre-roll
    H-mask that also zeroes every wrap-around across row / image boundaries.
    """
    idx = np.arange(NHW)
    hpos = (idx // W) % H
    wpos = idx % W
    ones = np.ones(NHW, bool)
    wmask = [wpos >= 1, ones, wpos <= W - 2]     # kw = 0,1,2  (taps read w-1, w, w+1)
    hmask = [hpos <= H - 2, ones, hpos >= 1]     # kh = 0,1,2  (pre-vertical-roll source rows)
    wd = np.asarray(wd_pt).reshape(C_B, 9)       # kh*3+kw tap order
    mw = np.zeros((9, C_B, NHW), np.float32)
    for kh in range(3):
        for kw in range(3):
            m = (wmask[kw] & hmask[kh]).astype(np.float32)
            mw[kh * 3 + kw] = wd[:, kh * 3 + kw][:, None] * m[None, :]
    return jnp.asarray(mw)


def make_params(key):
    ks = jax.random.split(key, 12)
    # PyTorch-shaped parameters (deterministic synthetic init)
    w1_pt = 0.1 * jax.random.normal(ks[0], (C_B, C_IN // GROUPS), jnp.float32)   # compress conv1x1, groups=3
    b1_pt = 0.1 * jax.random.normal(ks[1], (C_B,), jnp.float32)
    g1 = 1.0 + 0.1 * jax.random.normal(ks[2], (C_B,), jnp.float32)
    be1 = 0.1 * jax.random.normal(ks[3], (C_B,), jnp.float32)
    wd_pt = 0.1 * jax.random.normal(ks[4], (C_B, 1, 3, 3), jnp.float32)           # depthwise 3x3
    bd_pt = 0.1 * jax.random.normal(ks[5], (C_B,), jnp.float32)
    g2 = 1.0 + 0.1 * jax.random.normal(ks[6], (C_B,), jnp.float32)
    be2 = 0.1 * jax.random.normal(ks[7], (C_B,), jnp.float32)
    w3_pt = 0.1 * jax.random.normal(ks[8], (C_OUT, C_B // GROUPS), jnp.float32)   # expand conv1x1, groups=3
    b3_pt = 0.1 * jax.random.normal(ks[9], (C_OUT,), jnp.float32)
    g3 = 1.0 + 0.1 * jax.random.normal(ks[10], (C_OUT,), jnp.float32)
    be3 = 0.1 * jax.random.normal(ks[11], (C_OUT,), jnp.float32)

    pt = dict(w1_pt=w1_pt, b1_pt=b1_pt, g1=g1, be1=be1,
              wd_pt=wd_pt, bd_pt=bd_pt, g2=g2, be2=be2,
              w3_pt=w3_pt, b3_pt=b3_pt, g3=g3, be3=be3)

    # channel_shuffle permutation: new channel (k*groups + g) = old channel (g*cpg + k)
    cpg = C_B // GROUPS
    perm = np.array([g * cpg + k for k in range(cpg) for g in range(GROUPS)], np.int32)

    w1_full = block_diag_1x1(w1_pt, C_IN, C_B, GROUPS)        # (C_IN, C_B)
    w3_full = block_diag_1x1(w3_pt, C_B, C_OUT, GROUPS)       # (C_B, C_OUT)

    # channel-major weights (out_channels are rows); conv biases intentionally dropped
    # (they cancel exactly in the training-mode BatchNorm mean subtraction).
    kp = dict(
        invn=jnp.full((NHW, 1), 1.0 / NHW, jnp.float32),      # MXU reduction column
        w1=jnp.asarray(w1_full[:, perm].T),                   # (C_B, C_IN), shuffle folded
        g1=jnp.asarray(np.asarray(g1)[perm]).reshape(C_B, 1),
        be1=jnp.asarray(np.asarray(be1)[perm]).reshape(C_B, 1),
        mw=make_tap_planes(wd_pt),                            # (9, C_B, NHW) mask-folded taps
        g2=g2.reshape(C_B, 1),
        be2=be2.reshape(C_B, 1),
        w3=jnp.asarray(w3_full.T),                            # (C_OUT, C_B)
        g3=g3.reshape(C_OUT, 1),
        be3=be3.reshape(C_OUT, 1),
    )
    return pt, kp


# -------------------------- pure-JAX NCHW reference --------------------------
def reference_nchw(x, p):
    def conv(x, w, b, stride, pad, groups):
        y = jax.lax.conv_general_dilated(
            x, w, (stride, stride), [(pad, pad), (pad, pad)],
            dimension_numbers=('NCHW', 'OIHW', 'NCHW'),
            feature_group_count=groups)
        return y + b[None, :, None, None]

    def bn(x, gamma, beta):
        mu = jnp.mean(x, axis=(0, 2, 3), keepdims=True)
        var = jnp.mean((x - mu) ** 2, axis=(0, 2, 3), keepdims=True)
        return (x - mu) / jnp.sqrt(var + EPS) * gamma[None, :, None, None] + beta[None, :, None, None]

    def shuffle(x, groups):
        n, c, h, w = x.shape
        return jnp.transpose(x.reshape(n, groups, c // groups, h, w),
                             (0, 2, 1, 3, 4)).reshape(n, c, h, w)

    residual = x
    y = conv(x, p['w1_pt'][:, :, None, None], p['b1_pt'], 1, 0, GROUPS)
    y = jnp.maximum(bn(y, p['g1'], p['be1']), 0.0)
    y = shuffle(y, GROUPS)
    y = conv(y, p['wd_pt'], p['bd_pt'], 1, 1, C_B)
    y = bn(y, p['g2'], p['be2'])
    y = conv(y, p['w3_pt'][:, :, None, None], p['b3_pt'], 1, 0, GROUPS)
    y = bn(y, p['g3'], p['be3'])
    return residual + y


if __name__ == "__main__":
    key = jax.random.PRNGKey(0)
    kx, kparam = jax.random.split(key)
    x_nchw = jax.random.normal(kx, (N, C_IN, H, W), jnp.float32)   # PyTorch NCHW input
    pt_params, kernel_params = make_params(kparam)

    out_nchw = shuffle_unit_pallas(x_nchw, kernel_params)          # NCHW in, NCHW out
    jax.block_until_ready(out_nchw)

    ref = reference_nchw(x_nchw, pt_params)
    np.testing.assert_allclose(np.asarray(out_nchw), np.asarray(ref), atol=2e-3, rtol=2e-3)
    print("KERNEL_OK")
</pallas_src>

<mosaic_0001>
module attributes {stable_mosaic.version = 11 : i64} {
  func.func @shuffle_unit_kernel(%arg0: memref<2x24x256xf32, #tpu.memory_space<vmem>>, %arg1: memref<512x1xf32, #tpu.memory_space<vmem>>, %arg2: memref<6x24xf32, #tpu.memory_space<vmem>>, %arg3: memref<6x1xf32, #tpu.memory_space<vmem>>, %arg4: memref<6x1xf32, #tpu.memory_space<vmem>>, %arg5: memref<9x6x512xf32, #tpu.memory_space<vmem>>, %arg6: memref<6x1xf32, #tpu.memory_space<vmem>>, %arg7: memref<6x1xf32, #tpu.memory_space<vmem>>, %arg8: memref<24x6xf32, #tpu.memory_space<vmem>>, %arg9: memref<24x1xf32, #tpu.memory_space<vmem>>, %arg10: memref<24x1xf32, #tpu.memory_space<vmem>>, %arg11: memref<2x24x256xf32, #tpu.memory_space<vmem>>) attributes {dimension_semantics = [], scalar_prefetch = 0 : i64, scratch_operands = 0 : i64, tpu.core_type = #tpu.core_type<tc>} {
    %c0 = arith.constant 0 : index
    %c0_0 = arith.constant 0 : index
    %0 = vector.load %arg1[%c0, %c0_0] : memref<512x1xf32, #tpu.memory_space<vmem>>, vector<512x1xf32>
    %c0_1 = arith.constant 0 : index
    %c0_2 = arith.constant 0 : index
    %c0_3 = arith.constant 0 : index
    %1 = vector.load %arg0[%c0_1, %c0_2, %c0_3] : memref<2x24x256xf32, #tpu.memory_space<vmem>>, vector<1x24x256xf32>
    %2 = vector.shape_cast %1 : vector<1x24x256xf32> to vector<24x256xf32>
    %c1 = arith.constant 1 : index
    %c0_4 = arith.constant 0 : index
    %c0_5 = arith.constant 0 : index
    %3 = vector.load %arg0[%c1, %c0_4, %c0_5] : memref<2x24x256xf32, #tpu.memory_space<vmem>>, vector<1x24x256xf32>
    %4 = vector.shape_cast %3 : vector<1x24x256xf32> to vector<24x256xf32>
    %5 = tpu.concatenate %2, %4 in 1 : vector<24x256xf32>, vector<24x256xf32> -> vector<24x512xf32>
    %c0_6 = arith.constant 0 : index
    %c0_7 = arith.constant 0 : index
    %6 = vector.load %arg2[%c0_6, %c0_7] : memref<6x24xf32, #tpu.memory_space<vmem>>, vector<6x24xf32>
    %cst = arith.constant dense<0.000000e+00> : vector<6x512xf32>
    %7 = tpu.matmul %6, %5, %cst {dimension_numbers = #tpu.dot_dimension_numbers<[1], [0], [0], [1], [0, 0, 1, 1], [], []>} : vector<6x24xf32>, vector<24x512xf32>, vector<6x512xf32> -> vector<6x512xf32>
    %c0_8 = arith.constant 0 : index
    %c0_9 = arith.constant 0 : index
    %8 = vector.load %arg3[%c0_8, %c0_9] : memref<6x1xf32, #tpu.memory_space<vmem>>, vector<6x1xf32>
    %c0_10 = arith.constant 0 : index
    %c0_11 = arith.constant 0 : index
    %9 = vector.load %arg4[%c0_10, %c0_11] : memref<6x1xf32, #tpu.memory_space<vmem>>, vector<6x1xf32>
    %cst_12 = arith.constant dense<0.000000e+00> : vector<6x1xf32>
    %10 = tpu.matmul %7, %0, %cst_12 {dimension_numbers = #tpu.dot_dimension_numbers<[1], [0], [0], [1], [0, 0, 1, 1], [], []>} : vector<6x512xf32>, vector<512x1xf32>, vector<6x1xf32> -> vector<6x1xf32>
    %11 = arith.mulf %7, %7 : vector<6x512xf32>
    %cst_13 = arith.constant dense<0.000000e+00> : vector<6x1xf32>
    %12 = tpu.matmul %11, %0, %cst_13 {dimension_numbers = #tpu.dot_dimension_numbers<[1], [0], [0], [1], [0, 0, 1, 1], [], []>} : vector<6x512xf32>, vector<512x1xf32>, vector<6x1xf32> -> vector<6x1xf32>
    %13 = arith.mulf %10, %10 : vector<6x1xf32>
    %14 = arith.subf %12, %13 : vector<6x1xf32>
    %cst_14 = arith.constant 0.000000e+00 : f32
    %15 = vector.broadcast %cst_14 : f32 to vector<6x1xf32>
    %16 = arith.maximumf %14, %15 : vector<6x1xf32>
    %cst_15 = arith.constant 9.99999974E-6 : f32
    %17 = vector.broadcast %cst_15 : f32 to vector<6x1xf32>
    %18 = arith.addf %16, %17 : vector<6x1xf32>
    %19 = math.rsqrt %18 : vector<6x1xf32>
    %20 = arith.mulf %8, %19 : vector<6x1xf32>
    %21 = arith.mulf %10, %20 : vector<6x1xf32>
    %22 = arith.subf %9, %21 : vector<6x1xf32>
    %23 = vector.broadcast %20 : vector<6x1xf32> to vector<6x512xf32>
    %24 = arith.mulf %7, %23 : vector<6x512xf32>
    %25 = vector.broadcast %22 : vector<6x1xf32> to vector<6x512xf32>
    %26 = arith.addf %24, %25 : vector<6x512xf32>
    %cst_16 = arith.constant 0.000000e+00 : f32
    %27 = vector.broadcast %cst_16 : f32 to vector<6x512xf32>
    %28 = arith.maximumf %26, %27 : vector<6x512xf32>
    %c1_i32 = arith.constant 1 : i32
    %29 = tpu.dynamic_rotate %28 by %c1_i32 dim 1 : vector<6x512xf32>, i32 -> vector<6x512xf32>
    %c511_i32 = arith.constant 511 : i32
    %30 = tpu.dynamic_rotate %28 by %c511_i32 dim 1 : vector<6x512xf32>, i32 -> vector<6x512xf32>
    %c0_17 = arith.constant 0 : index
    %c0_18 = arith.constant 0 : index
    %c0_19 = arith.constant 0 : index
    %31 = vector.load %arg5[%c0_17, %c0_18, %c0_19] : memref<9x6x512xf32, #tpu.memory_space<vmem>>, vector<1x6x512xf32>
    %32 = vector.shape_cast %31 : vector<1x6x512xf32> to vector<6x512xf32>
    %33 = arith.mulf %32, %29 : vector<6x512xf32>
    %c1_20 = arith.constant 1 : index
    %c0_21 = arith.constant 0 : index
    %c0_22 = arith.constant 0 : index
    %34 = vector.load %arg5[%c1_20, %c0_21, %c0_22] : memref<9x6x512xf32, #tpu.memory_space<vmem>>, vector<1x6x512xf32>
    %35 = vector.shape_cast %34 : vector<1x6x512xf32> to vector<6x512xf32>
    %36 = arith.mulf %35, %28 : vector<6x512xf32>
    %37 = arith.addf %33, %36 : vector<6x512xf32>
    %c2 = arith.constant 2 : index
    %c0_23 = arith.constant 0 : index
    %c0_24 = arith.constant 0 : index
    %38 = vector.load %arg5[%c2, %c0_23, %c0_24] : memref<9x6x512xf32, #tpu.memory_space<vmem>>, vector<1x6x512xf32>
    %39 = vector.shape_cast %38 : vector<1x6x512xf32> to vector<6x512xf32>
    %40 = arith.mulf %39, %30 : vector<6x512xf32>
    %41 = arith.addf %37, %40 : vector<6x512xf32>
    %c3 = arith.constant 3 : index
    %c0_25 = arith.constant 0 : index
    %c0_26 = arith.constant 0 : index
    %42 = vector.load %arg5[%c3, %c0_25, %c0_26] : memref<9x6x512xf32, #tpu.memory_space<vmem>>, vector<1x6x512xf32>
    %43 = vector.shape_cast %42 : vector<1x6x512xf32> to vector<6x512xf32>
    %44 = arith.mulf %43, %29 : vector<6x512xf32>
    %c4 = arith.constant 4 : index
    %c0_27 = arith.constant 0 : index
    %c0_28 = arith.constant 0 : index
    %45 = vector.load %arg5[%c4, %c0_27, %c0_28] : memref<9x6x512xf32, #tpu.memory_space<vmem>>, vector<1x6x512xf32>
    %46 = vector.shape_cast %45 : vector<1x6x512xf32> to vector<6x512xf32>
    %47 = arith.mulf %46, %28 : vector<6x512xf32>
    %48 = arith.addf %44, %47 : vector<6x512xf32>
    %c5 = arith.constant 5 : index
    %c0_29 = arith.constant 0 : index
    %c0_30 = arith.constant 0 : index
    %49 = vector.load %arg5[%c5, %c0_29, %c0_30] : memref<9x6x512xf32, #tpu.memory_space<vmem>>, vector<1x6x512xf32>
    %50 = vector.shape_cast %49 : vector<1x6x512xf32> to vector<6x512xf32>
    %51 = arith.mulf %50, %30 : vector<6x512xf32>
    %52 = arith.addf %48, %51 : vector<6x512xf32>
    %c6 = arith.constant 6 : index
    %c0_31 = arith.constant 0 : index
    %c0_32 = arith.constant 0 : index
    %53 = vector.load %arg5[%c6, %c0_31, %c0_32] : memref<9x6x512xf32, #tpu.memory_space<vmem>>, vector<1x6x512xf32>
    %54 = vector.shape_cast %53 : vector<1x6x512xf32> to vector<6x512xf32>
    %55 = arith.mulf %54, %29 : vector<6x512xf32>
    %c7 = arith.constant 7 : index
    %c0_33 = arith.constant 0 : index
    %c0_34 = arith.constant 0 : index
    %56 = vector.load %arg5[%c7, %c0_33, %c0_34] : memref<9x6x512xf32, #tpu.memory_space<vmem>>, vector<1x6x512xf32>
    %57 = vector.shape_cast %56 : vector<1x6x512xf32> to vector<6x512xf32>
    %58 = arith.mulf %57, %28 : vector<6x512xf32>
    %59 = arith.addf %55, %58 : vector<6x512xf32>
    %c8 = arith.constant 8 : index
    %c0_35 = arith.constant 0 : index
    %c0_36 = arith.constant 0 : index
    %60 = vector.load %arg5[%c8, %c0_35, %c0_36] : memref<9x6x512xf32, #tpu.memory_space<vmem>>, vector<1x6x512xf32>
    %61 = vector.shape_cast %60 : vector<1x6x512xf32> to vector<6x512xf32>
    %62 = arith.mulf %61, %30 : vector<6x512xf32>
    %63 = arith.addf %59, %62 : vector<6x512xf32>
    %c16_i32 = arith.constant 16 : i32
    %64 = tpu.dynamic_rotate %41 by %c16_i32 dim 1 : vector<6x512xf32>, i32 -> vector<6x512xf32>
    %65 = arith.addf %64, %52 : vector<6x512xf32>
    %c496_i32 = arith.constant 496 : i32
    %66 = tpu.dynamic_rotate %63 by %c496_i32 dim 1 : vector<6x512xf32>, i32 -> vector<6x512xf32>
    %67 = arith.addf %65, %66 : vector<6x512xf32>
    %c0_37 = arith.constant 0 : index
    %c0_38 = arith.constant 0 : index
    %68 = vector.load %arg6[%c0_37, %c0_38] : memref<6x1xf32, #tpu.memory_space<vmem>>, vector<6x1xf32>
    %c0_39 = arith.constant 0 : index
    %c0_40 = arith.constant 0 : index
    %69 = vector.load %arg7[%c0_39, %c0_40] : memref<6x1xf32, #tpu.memory_space<vmem>>, vector<6x1xf32>
    %cst_41 = arith.constant dense<0.000000e+00> : vector<6x1xf32>
    %70 = tpu.matmul %67, %0, %cst_41 {dimension_numbers = #tpu.dot_dimension_numbers<[1], [0], [0], [1], [0, 0, 1, 1], [], []>} : vector<6x512xf32>, vector<512x1xf32>, vector<6x1xf32> -> vector<6x1xf32>
    %71 = arith.mulf %67, %67 : vector<6x512xf32>
    %cst_42 = arith.constant dense<0.000000e+00> : vector<6x1xf32>
    %72 = tpu.matmul %71, %0, %cst_42 {dimension_numbers = #tpu.dot_dimension_numbers<[1], [0], [0], [1], [0, 0, 1, 1], [], []>} : vector<6x512xf32>, vector<512x1xf32>, vector<6x1xf32> -> vector<6x1xf32>
    %73 = arith.mulf %70, %70 : vector<6x1xf32>
    %74 = arith.subf %72, %73 : vector<6x1xf32>
    %cst_43 = arith.constant 0.000000e+00 : f32
    %75 = vector.broadcast %cst_43 : f32 to vector<6x1xf32>
    %76 = arith.maximumf %74, %75 : vector<6x1xf32>
    %cst_44 = arith.constant 9.99999974E-6 : f32
    %77 = vector.broadcast %cst_44 : f32 to vector<6x1xf32>
    %78 = arith.addf %76, %77 : vector<6x1xf32>
    %79 = math.rsqrt %78 : vector<6x1xf32>
    %80 = arith.mulf %68, %79 : vector<6x1xf32>
    %81 = arith.mulf %70, %80 : vector<6x1xf32>
    %82 = arith.subf %69, %81 : vector<6x1xf32>
    %83 = vector.broadcast %80 : vector<6x1xf32> to vector<6x512xf32>
    %84 = arith.mulf %67, %83 : vector<6x512xf32>
    %85 = vector.broadcast %82 : vector<6x1xf32> to vector<6x512xf32>
    %86 = arith.addf %84, %85 : vector<6x512xf32>
    %c0_45 = arith.constant 0 : index
    %c0_46 = arith.constant 0 : index
    %87 = vector.load %arg8[%c0_45, %c0_46] : memref<24x6xf32, #tpu.memory_space<vmem>>, vector<24x6xf32>
    %cst_47 = arith.constant dense<0.000000e+00> : vector<24x512xf32>
    %88 = tpu.matmul %87, %86, %cst_47 {dimension_numbers = #tpu.dot_dimension_numbers<[1], [0], [0], [1], [0, 0, 1, 1], [], []>} : vector<24x6xf32>, vector<6x512xf32>, vector<24x512xf32> -> vector<24x512xf32>
    %c0_48 = arith.constant 0 : index
    %c0_49 = arith.constant 0 : index
    %89 = vector.load %arg9[%c0_48, %c0_49] : memref<24x1xf32, #tpu.memory_space<vmem>>, vector<24x1xf32>
    %c0_50 = arith.constant 0 : index
    %c0_51 = arith.constant 0 : index
    %90 = vector.load %arg10[%c0_50, %c0_51] : memref<24x1xf32, #tpu.memory_space<vmem>>, vector<24x1xf32>
    %cst_52 = arith.constant dense<0.000000e+00> : vector<24x1xf32>
    %91 = tpu.matmul %88, %0, %cst_52 {dimension_numbers = #tpu.dot_dimension_numbers<[1], [0], [0], [1], [0, 0, 1, 1], [], []>} : vector<24x512xf32>, vector<512x1xf32>, vector<24x1xf32> -> vector<24x1xf32>
    %92 = arith.mulf %88, %88 : vector<24x512xf32>
    %cst_53 = arith.constant dense<0.000000e+00> : vector<24x1xf32>
    %93 = tpu.matmul %92, %0, %cst_53 {dimension_numbers = #tpu.dot_dimension_numbers<[1], [0], [0], [1], [0, 0, 1, 1], [], []>} : vector<24x512xf32>, vector<512x1xf32>, vector<24x1xf32> -> vector<24x1xf32>
    %94 = arith.mulf %91, %91 : vector<24x1xf32>
    %95 = arith.subf %93, %94 : vector<24x1xf32>
    %cst_54 = arith.constant 0.000000e+00 : f32
    %96 = vector.broadcast %cst_54 : f32 to vector<24x1xf32>
    %97 = arith.maximumf %95, %96 : vector<24x1xf32>
    %cst_55 = arith.constant 9.99999974E-6 : f32
    %98 = vector.broadcast %cst_55 : f32 to vector<24x1xf32>
    %99 = arith.addf %97, %98 : vector<24x1xf32>
    %100 = math.rsqrt %99 : vector<24x1xf32>
    %101 = arith.mulf %89, %100 : vector<24x1xf32>
    %102 = arith.mulf %91, %101 : vector<24x1xf32>
    %103 = arith.subf %90, %102 : vector<24x1xf32>
    %104 = vector.broadcast %101 : vector<24x1xf32> to vector<24x512xf32>
    %105 = arith.mulf %88, %104 : vector<24x512xf32>
    %106 = vector.broadcast %103 : vector<24x1xf32> to vector<24x512xf32>
    %107 = arith.addf %105, %106 : vector<24x512xf32>
    %108 = vector.extract_strided_slice %107 {offsets = [0, 0], sizes = [24, 256], strides = [1, 1]} : vector<24x512xf32> to vector<24x256xf32>
    %c0_56 = arith.constant 0 : index
    %c0_57 = arith.constant 0 : index
    %c0_58 = arith.constant 0 : index
    %109 = vector.load %arg0[%c0_56, %c0_57, %c0_58] : memref<2x24x256xf32, #tpu.memory_space<vmem>>, vector<1x24x256xf32>
    %110 = vector.shape_cast %109 : vector<1x24x256xf32> to vector<24x256xf32>
    %111 = arith.addf %108, %110 : vector<24x256xf32>
    %c0_59 = arith.constant 0 : index
    %c0_60 = arith.constant 0 : index
    %c0_61 = arith.constant 0 : index
    %112 = vector.load %arg11[%c0_59, %c0_60, %c0_61] : memref<2x24x256xf32, #tpu.memory_space<vmem>>, vector<1x24x256xf32>
    %113 = vector.shape_cast %112 : vector<1x24x256xf32> to vector<24x256xf32>
    %114 = vector.shape_cast %111 : vector<24x256xf32> to vector<1x24x256xf32>
    tpu.vector_store %arg11[%c0_59, %c0_60, %c0_61], %114 {strides = array<i32>} : memref<2x24x256xf32, #tpu.memory_space<vmem>>, vector<1x24x256xf32>,
    %115 = vector.extract_strided_slice %107 {offsets = [0, 256], sizes = [24, 256], strides = [1, 1]} : vector<24x512xf32> to vector<24x256xf32>
    %c1_62 = arith.constant 1 : index
    %c0_63 = arith.constant 0 : index
    %c0_64 = arith.constant 0 : index
    %116 = vector.load %arg0[%c1_62, %c0_63, %c0_64] : memref<2x24x256xf32, #tpu.memory_space<vmem>>, vector<1x24x256xf32>
    %117 = vector.shape_cast %116 : vector<1x24x256xf32> to vector<24x256xf32>
    %118 = arith.addf %115, %117 : vector<24x256xf32>
    %c1_65 = arith.constant 1 : index
    %c0_66 = arith.constant 0 : index
    %c0_67 = arith.constant 0 : index
    %119 = vector.load %arg11[%c1_65, %c0_66, %c0_67] : memref<2x24x256xf32, #tpu.memory_space<vmem>>, vector<1x24x256xf32>
    %120 = vector.shape_cast %119 : vector<1x24x256xf32> to vector<24x256xf32>
    %121 = vector.shape_cast %118 : vector<24x256xf32> to vector<1x24x256xf32>
    tpu.vector_store %arg11[%c1_65, %c0_66, %c0_67], %121 {strides = array<i32>} : memref<2x24x256xf32, #tpu.memory_space<vmem>>, vector<1x24x256xf32>,
    return
  }
}

</mosaic_0001>

<llo_original>
// kernel: tpu_custom_call.1
$region0: #{tpu_custom_call.1}
  #allocation0 [shape = 'u32[]', space=smem, size = 0x4, offset = 0x4, fixed_abs, tag = 'smem constant byte address 0x4 - core index']
  #allocation1 [shape = 'u32[144,128]{1,0:T(1,128)}', space=vmem, size = 0x12000, scoped, tag = 'internal scratch']
  %s0 = inlined_call_operand.vmem [shape: f32[2,24,256], index: 0, kind: input, shape index: {}]
  %s1 = inlined_call_operand.vmem [shape: f32[512,1], index: 1, kind: input, shape index: {}]
  %s2 = inlined_call_operand.vmem [shape: f32[6,24], index: 2, kind: input, shape index: {}]
  %s3 = inlined_call_operand.vmem [shape: f32[6,1], index: 3, kind: input, shape index: {}]
  %s4 = inlined_call_operand.vmem [shape: f32[6,1], index: 4, kind: input, shape index: {}]
  %s5 = inlined_call_operand.vmem [shape: f32[9,6,512], index: 5, kind: input, shape index: {}]
  %s6 = inlined_call_operand.vmem [shape: f32[6,1], index: 6, kind: input, shape index: {}]
  %s7 = inlined_call_operand.vmem [shape: f32[6,1], index: 7, kind: input, shape index: {}]
  %s8 = inlined_call_operand.vmem [shape: f32[24,6], index: 8, kind: input, shape index: {}]
  %s9 = inlined_call_operand.vmem [shape: f32[24,1], index: 9, kind: input, shape index: {}]
  %s10 = inlined_call_operand.vmem [shape: f32[24,1], index: 10, kind: input, shape index: {}]
  %s11 = inlined_call_operand.hbm [shape: f32[2,24,256], index: 11, kind: output, shape index: {}]
  %s12 = sld [smem:[#allocation0]]
  $region54: #{tpu_custom_call.1} parent=0
    _
  %s14 = ssub.s32 1, %s12
  %s15 = scalar_select 0, %s14, %s12
  $region1: #{tpu_custom_call.1} parent=0
    #allocation2 [shape = 'u8[49152]{0}', space=vmem, size = 0xc000, scoped, tag = 'output window, operand 0, single buffered']
    #allocation3 [shape = 's32[1]{0}', space=sflag, size = 0x4, scoped, tag = 'scoped memory for tpu_custom_call.1']
    %16 = vsyncpa [#allocation3], 0
    // Predicated region
    $region2: #{tpu_custom_call.1} parent=1 // pred_check
      _
    $region3: #{tpu_custom_call.1} parent=1 // pred_check_branch
      %18 = sbr.rel (0) target = $region5
    $region4: #{tpu_custom_call.1} parent=1 // pred_region
      _
    $region5: #{tpu_custom_call.1} parent=1 // pred_fallthru
      _
    // Predicated region
    $region6: #{tpu_custom_call.1} parent=1 // pred_check
      _
    $region7: #{tpu_custom_call.1} parent=1 // pred_check_branch
      %20 = sbr.rel (0) target = $region9
    $region8: #{tpu_custom_call.1} parent=1 // pred_region
      _
    $region9: #{tpu_custom_call.1} parent=1 // pred_fallthru
      _
    // Predicated region
    $region10: #{tpu_custom_call.1} parent=1 // pred_check
      _
    $region11: #{tpu_custom_call.1} parent=1 // pred_check_branch
      %22 = sbr.rel (0) target = $region13
    $region12: #{tpu_custom_call.1} parent=1 // pred_region
      _
    $region13: #{tpu_custom_call.1} parent=1 // pred_fallthru
      _
    // Predicated region
    $region14: #{tpu_custom_call.1} parent=1 // pred_check
      _
    $region15: #{tpu_custom_call.1} parent=1 // pred_check_branch
      %24 = sbr.rel (0) target = $region17
    $region16: #{tpu_custom_call.1} parent=1 // pred_region
      _
    $region17: #{tpu_custom_call.1} parent=1 // pred_fallthru
      _
    // Predicated region
    $region18: #{tpu_custom_call.1} parent=1 // pred_check
      _
    $region19: #{tpu_custom_call.1} parent=1 // pred_check_branch
      %26 = sbr.rel (0) target = $region21
    $region20: #{tpu_custom_call.1} parent=1 // pred_region
      _
    $region21: #{tpu_custom_call.1} parent=1 // pred_fallthru
      _
    // Predicated region
    $region22: #{tpu_custom_call.1} parent=1 // pred_check
      _
    $region23: #{tpu_custom_call.1} parent=1 // pred_check_branch
      %28 = sbr.rel (0) target = $region25
    $region24: #{tpu_custom_call.1} parent=1 // pred_region
      _
    $region25: #{tpu_custom_call.1} parent=1 // pred_fallthru
      _
    // Predicated region
    $region26: #{tpu_custom_call.1} parent=1 // pred_check
      _
    $region27: #{tpu_custom_call.1} parent=1 // pred_check_branch
      %30 = sbr.rel (0) target = $region29
    $region28: #{tpu_custom_call.1} parent=1 // pred_region
      _
    $region29: #{tpu_custom_call.1} parent=1 // pred_fallthru
      _
    // Predicated region
    $region30: #{tpu_custom_call.1} parent=1 // pred_check
      _
    $region31: #{tpu_custom_call.1} parent=1 // pred_check_branch
      %32 = sbr.rel (0) target = $region33
    $region32: #{tpu_custom_call.1} parent=1 // pred_region
      _
    $region33: #{tpu_custom_call.1} parent=1 // pred_fallthru
      _
    // Predicated region
    $region34: #{tpu_custom_call.1} parent=1 // pred_check
      _
    $region35: #{tpu_custom_call.1} parent=1 // pred_check_branch
      %34 = sbr.rel (0) target = $region37
    $region36: #{tpu_custom_call.1} parent=1 // pred_region
      _
    $region37: #{tpu_custom_call.1} parent=1 // pred_fallthru
      _
    // Predicated region
    $region38: #{tpu_custom_call.1} parent=1 // pred_check
      _
    $region39: #{tpu_custom_call.1} parent=1 // pred_check_branch
      %36 = sbr.rel (0) target = $region41
    $region40: #{tpu_custom_call.1} parent=1 // pred_region
      _
    $region41: #{tpu_custom_call.1} parent=1 // pred_fallthru
      _
    // Predicated region
    $region42: #{tpu_custom_call.1} parent=1 // pred_check
      _
    $region43: #{tpu_custom_call.1} parent=1 // pred_check_branch
      %38 = sbr.rel (0) target = $region45
    $region44: #{tpu_custom_call.1} parent=1 // pred_region
      _
    $region45: #{tpu_custom_call.1} parent=1 // pred_fallthru
      _
    %v39 = vld [vmem:[%s1] sm:$0xff]
    %v40 = vld [vmem:[%s1 + $0x8] sm:$0xff]
    %v41 = vld [vmem:[%s1 + $0x10] sm:$0xff]
    %v42 = vld [vmem:[%s1 + $0x18] sm:$0xff]
    %v43 = vld [vmem:[%s1 + $0x20] sm:$0xff]
    %v44 = vld [vmem:[%s1 + $0x28] sm:$0xff]
    %v45 = vld [vmem:[%s1 + $0x30] sm:$0xff]
    %v46 = vld [vmem:[%s1 + $0x38] sm:$0xff]
    %v47 = vld [vmem:[%s1 + $0x40] sm:$0xff]
    %v48 = vld [vmem:[%s1 + $0x48] sm:$0xff]
    %v49 = vld [vmem:[%s1 + $0x50] sm:$0xff]
    %v50 = vld [vmem:[%s1 + $0x58] sm:$0xff]
    %v51 = vld [vmem:[%s1 + $0x60] sm:$0xff]
    %v52 = vld [vmem:[%s1 + $0x68] sm:$0xff]
    %v53 = vld [vmem:[%s1 + $0x70] sm:$0xff]
    %v54 = vld [vmem:[%s1 + $0x78] sm:$0xff]
    %v55 = vld [vmem:[%s1 + $0x80] sm:$0xff]
    %v56 = vld [vmem:[%s1 + $0x88] sm:$0xff]
    %v57 = vld [vmem:[%s1 + $0x90] sm:$0xff]
    %v58 = vld [vmem:[%s1 + $0x98] sm:$0xff]
    %v59 = vld [vmem:[%s1 + $0xa0] sm:$0xff]
    %v60 = vld [vmem:[%s1 + $0xa8] sm:$0xff]
    %v61 = vld [vmem:[%s1 + $0xb0] sm:$0xff]
    %v62 = vld [vmem:[%s1 + $0xb8] sm:$0xff]
    %v63 = vld [vmem:[%s1 + $0xc0] sm:$0xff]
    %v64 = vld [vmem:[%s1 + $0xc8] sm:$0xff]
    %v65 = vld [vmem:[%s1 + $0xd0] sm:$0xff]
    %v66 = vld [vmem:[%s1 + $0xd8] sm:$0xff]
    %v67 = vld [vmem:[%s1 + $0xe0] sm:$0xff]
    %v68 = vld [vmem:[%s1 + $0xe8] sm:$0xff]
    %v69 = vld [vmem:[%s1 + $0xf0] sm:$0xff]
    %v70 = vld [vmem:[%s1 + $0xf8] sm:$0xff]
    %v71 = vld [vmem:[%s1 + $0x100] sm:$0xff]
    %v72 = vld [vmem:[%s1 + $0x108] sm:$0xff]
    %v73 = vld [vmem:[%s1 + $0x110] sm:$0xff]
    %v74 = vld [vmem:[%s1 + $0x118] sm:$0xff]
    %v75 = vld [vmem:[%s1 + $0x120] sm:$0xff]
    %v76 = vld [vmem:[%s1 + $0x128] sm:$0xff]
    %v77 = vld [vmem:[%s1 + $0x130] sm:$0xff]
    %v78 = vld [vmem:[%s1 + $0x138] sm:$0xff]
    %v79 = vld [vmem:[%s1 + $0x140] sm:$0xff]
    %v80 = vld [vmem:[%s1 + $0x148] sm:$0xff]
    %v81 = vld [vmem:[%s1 + $0x150] sm:$0xff]
    %v82 = vld [vmem:[%s1 + $0x158] sm:$0xff]
    %v83 = vld [vmem:[%s1 + $0x160] sm:$0xff]
    %v84 = vld [vmem:[%s1 + $0x168] sm:$0xff]
    %v85 = vld [vmem:[%s1 + $0x170] sm:$0xff]
    %v86 = vld [vmem:[%s1 + $0x178] sm:$0xff]
    %v87 = vld [vmem:[%s1 + $0x180] sm:$0xff]
    %v88 = vld [vmem:[%s1 + $0x188] sm:$0xff]
    %v89 = vld [vmem:[%s1 + $0x190] sm:$0xff]
    %v90 = vld [vmem:[%s1 + $0x198] sm:$0xff]
    %v91 = vld [vmem:[%s1 + $0x1a0] sm:$0xff]
    %v92 = vld [vmem:[%s1 + $0x1a8] sm:$0xff]
    %v93 = vld [vmem:[%s1 + $0x1b0] sm:$0xff]
    %v94 = vld [vmem:[%s1 + $0x1b8] sm:$0xff]
    %v95 = vld [vmem:[%s1 + $0x1c0] sm:$0xff]
    %v96 = vld [vmem:[%s1 + $0x1c8] sm:$0xff]
    %v97 = vld [vmem:[%s1 + $0x1d0] sm:$0xff]
    %v98 = vld [vmem:[%s1 + $0x1d8] sm:$0xff]
    %v99 = vld [vmem:[%s1 + $0x1e0] sm:$0xff]
    %v100 = vld [vmem:[%s1 + $0x1e8] sm:$0xff]
    %v101 = vld [vmem:[%s1 + $0x1f0] sm:$0xff]
    %v102 = vld [vmem:[%s1 + $0x1f8] sm:$0xff]
    %v103 = vld [vmem:[%s0] sm:$0xff]
    %v104 = vld [vmem:[%s0 + $0x8] sm:$0xff]
    %v105 = vld [vmem:[%s0 + $0x10] sm:$0xff]
    %v106 = vld [vmem:[%s0 + $0x18] sm:$0xff]
    %v107 = vld [vmem:[%s0 + $0x20] sm:$0xff]
    %v108 = vld [vmem:[%s0 + $0x28] sm:$0xff]
    %s109 = scalar_lea.vmem %s0, 48
    %v110 = vld [vmem:[%s109] sm:$0xff]
    %v111 = vld [vmem:[%s109 + $0x8] sm:$0xff]
    %v112 = vld [vmem:[%s109 + $0x10] sm:$0xff]
    %v113 = vld [vmem:[%s109 + $0x18] sm:$0xff]
    %v114 = vld [vmem:[%s109 + $0x20] sm:$0xff]
    %v115 = vld [vmem:[%s109 + $0x28] sm:$0xff]
    %v116 = vld [vmem:[%s2] sm:$0x3f]
    %vm117 = vcmask 195584
    %v119 = vsel %vm117, %v116, 0
    %121 = vmatprep.subr.mxu0 %v104
    %122 = vmatpush1.msra.mxu0 %v103
    %123 = vmatprep.subr.mxu0 %v106
    %124 = vmatpush1.msra.mxu0 %v105
    %125 = vmatprep.subr.mxu0 %v108
    %126 = vmatpush1.msra.mxu0 %v107
    %127 = vmatprep.subr.mxu0 0.0
    %128 = vmatpush1.msra.mxu0 0.0
    %129 = vmatprep.subr.mxu0 0.0
    %130 = vmatpush1.msra.mxu0 0.0
    %131 = vmatprep.subr.mxu0 0.0
    %132 = vmatpush1.msra.mxu0 0.0
    %133 = vmatprep.subr.mxu0 0.0
    %134 = vmatpush1.msra.mxu0 0.0
    %135 = vmatprep.subr.mxu0 0.0
    %136 = vmatpush1.msra.mxu0 0.0
    %137 = vmatprep.subr.mxu0 0.0
    %138 = vmatpush1.msra.mxu0 0.0
    %139 = vmatprep.subr.mxu0 0.0
    %140 = vmatpush1.msra.mxu0 0.0
    %141 = vmatprep.subr.mxu0 0.0
    %142 = vmatpush1.msra.mxu0 0.0
    %143 = vmatprep.subr.mxu0 0.0
    %144 = vmatpush1.msra.mxu0 0.0
    %145 = vmatprep.subr.mxu0 0.0
    %146 = vmatpush1.msra.mxu0 0.0
    %147 = vmatprep.subr.mxu0 0.0
    %148 = vmatpush1.msra.mxu0 0.0
    %149 = vmatprep.subr.mxu0 0.0
    %150 = vmatpush1.msra.mxu0 0.0
    %151 = vmatprep.subr.mxu0 0.0
    %152 = vmatpush1.msra.mxu0 0.0
    %153 = vmatprep.subr.mxu0 0.0
    %154 = vmatpush1.msra.mxu0 0.0
    %155 = vmatprep.subr.mxu0 0.0
    %156 = vmatpush1.msra.mxu0 0.0
    %157 = vmatprep.subr.mxu0 0.0
    %158 = vmatpush1.msra.mxu0 0.0
    %159 = vmatprep.subr.mxu0 0.0
    %160 = vmatpush1.msra.mxu0 0.0
    %161 = vmatprep.subr.mxu0 0.0
    %162 = vmatpush1.msra.mxu0 0.0
    %163 = vmatprep.subr.mxu0 0.0
    %164 = vmatpush1.msra.mxu0 0.0
    %165 = vmatprep.subr.mxu0 0.0
    %166 = vmatpush1.msra.mxu0 0.0
    %167 = vmatprep.subr.mxu0 0.0
    %168 = vmatpush1.msra.mxu0 0.0
    %169 = vmatprep.subr.mxu0 0.0
    %170 = vmatpush1.msra.mxu0 0.0
    %171 = vmatprep.subr.mxu0 0.0
    %172 = vmatpush1.msra.mxu0 0.0
    %173 = vmatprep.subr.mxu0 0.0
    %174 = vmatpush1.msra.mxu0 0.0
    %175 = vmatprep.subr.mxu0 0.0
    %176 = vmatpush1.msra.mxu0 0.0
    %177 = vmatprep.subr.mxu0 0.0
    %178 = vmatpush1.msra.mxu0 0.0
    %179 = vmatprep.subr.mxu0 0.0
    %180 = vmatpush1.msra.mxu0 0.0
    %181 = vmatprep.subr.mxu0 0.0
    %182 = vmatpush1.msra.mxu0 0.0
    %183 = vmatprep.subr.mxu0 0.0
    %184 = vmatpush1.msra.mxu0 0.0
    %185 = vmatprep.mubr.f32.mxu0 0.0
    %186 = vmatmul.mubr.f32.gmra.mrb[0].mxu0 %v119
    %v187 = vpop.f32.mrb[0].mxu0
    %v188 = vadd.f32 0.0, %v187
    %v189 = vpop.f32.mrb[0].mxu0
    %v190 = vadd.f32 0.0, %v189
    %191 = vdwg.mxu0
    %192 = vmatprep.subr.mxu0 %v111
    %193 = vmatpush1.msra.mxu0 %v110
    %194 = vmatprep.subr.mxu0 %v113
    %195 = vmatpush1.msra.mxu0 %v112
    %196 = vmatprep.subr.mxu0 %v115
    %197 = vmatpush1.msra.mxu0 %v114
    %198 = vmatprep.subr.mxu0 0.0
    %199 = vmatpush1.msra.mxu0 0.0
    %200 = vmatprep.subr.mxu0 0.0
    %201 = vmatpush1.msra.mxu0 0.0
    %202 = vmatprep.subr.mxu0 0.0
    %203 = vmatpush1.msra.mxu0 0.0
    %204 = vmatprep.subr.mxu0 0.0
    %205 = vmatpush1.msra.mxu0 0.0
    %206 = vmatprep.subr.mxu0 0.0
    %207 = vmatpush1.msra.mxu0 0.0
    %208 = vmatprep.subr.mxu0 0.0
    %209 = vmatpush1.msra.mxu0 0.0
    %210 = vmatprep.subr.mxu0 0.0
    %211 = vmatpush1.msra.mxu0 0.0
    %212 = vmatprep.subr.mxu0 0.0
    %213 = vmatpush1.msra.mxu0 0.0
    %214 = vmatprep.subr.mxu0 0.0
    %215 = vmatpush1.msra.mxu0 0.0
    %216 = vmatprep.subr.mxu0 0.0
    %217 = vmatpush1.msra.mxu0 0.0
    %218 = vmatprep.subr.mxu0 0.0
    %219 = vmatpush1.msra.mxu0 0.0
    %220 = vmatprep.subr.mxu0 0.0
    %221 = vmatpush1.msra.mxu0 0.0
    %222 = vmatprep.subr.mxu0 0.0
    %223 = vmatpush1.msra.mxu0 0.0
    %224 = vmatprep.subr.mxu0 0.0
    %225 = vmatpush1.msra.mxu0 0.0
    %226 = vmatprep.subr.mxu0 0.0
    %227 = vmatpush1.msra.mxu0 0.0
    %228 = vmatprep.subr.mxu0 0.0
    %229 = vmatpush1.msra.mxu0 0.0
    %230 = vmatprep.subr.mxu0 0.0
    %231 = vmatpush1.msra.mxu0 0.0
    %232 = vmatprep.subr.mxu0 0.0
    %233 = vmatpush1.msra.mxu0 0.0
    %234 = vmatprep.subr.mxu0 0.0
    %235 = vmatpush1.msra.mxu0 0.0
    %236 = vmatprep.subr.mxu0 0.0
    %237 = vmatpush1.msra.mxu0 0.0
    %238 = vmatprep.subr.mxu0 0.0
    %239 = vmatpush1.msra.mxu0 0.0
    %240 = vmatprep.subr.mxu0 0.0
    %241 = vmatpush1.msra.mxu0 0.0
    %242 = vmatprep.subr.mxu0 0.0
    %243 = vmatpush1.msra.mxu0 0.0
    %244 = vmatprep.subr.mxu0 0.0
    %245 = vmatpush1.msra.mxu0 0.0
    %246 = vmatprep.subr.mxu0 0.0
    %247 = vmatpush1.msra.mxu0 0.0
    %248 = vmatprep.subr.mxu0 0.0
    %249 = vmatpush1.msra.mxu0 0.0
    %250 = vmatprep.subr.mxu0 0.0
    %251 = vmatpush1.msra.mxu0 0.0
    %252 = vmatprep.subr.mxu0 0.0
    %253 = vmatpush1.msra.mxu0 0.0
    %254 = vmatprep.subr.mxu0 0.0
    %255 = vmatpush1.msra.mxu0 0.0
    %256 = vmatprep.mubr.f32.mxu0 0.0
    %257 = vmatmul.mubr.f32.gmra.mrb[0].mxu0 %v119
    %v258 = vpop.f32.mrb[0].mxu0
    %v259 = vadd.f32 0.0, %v258
    %v260 = vpop.f32.mrb[0].mxu0
    %v261 = vadd.f32 0.0, %v260
    %262 = vdwg.mxu0
    %v263 = vld [vmem:[%s3] sm:$0x3f]
    %v264 = vld [vmem:[%s4] sm:$0x3f]
    %265 = vmatprep.subr.mxu0 0.0
    %266 = vmatpush1.msra.mxu0 %v39
    %267 = vmatprep.subr.mxu0 0.0
    %268 = vmatpush1.msra.mxu0 %v40
    %269 = vmatprep.subr.mxu0 0.0
    %270 = vmatpush1.msra.mxu0 %v41
    %271 = vmatprep.subr.mxu0 0.0
    %272 = vmatpush1.msra.mxu0 %v42
    %273 = vmatprep.subr.mxu0 0.0
    %274 = vmatpush1.msra.mxu0 %v43
    %275 = vmatprep.subr.mxu0 0.0
    %276 = vmatpush1.msra.mxu0 %v44
    %277 = vmatprep.subr.mxu0 0.0
    %278 = vmatpush1.msra.mxu0 %v45
    %279 = vmatprep.subr.mxu0 0.0
    %280 = vmatpush1.msra.mxu0 %v46
    %281 = vmatprep.subr.mxu0 0.0
    %282 = vmatpush1.msra.mxu0 %v47
    %283 = vmatprep.subr.mxu0 0.0
    %284 = vmatpush1.msra.mxu0 %v48
    %285 = vmatprep.subr.mxu0 0.0
    %286 = vmatpush1.msra.mxu0 %v49
    %287 = vmatprep.subr.mxu0 0.0
    %288 = vmatpush1.msra.mxu0 %v50
    %289 = vmatprep.subr.mxu0 0.0
    %290 = vmatpush1.msra.mxu0 %v51
    %291 = vmatprep.subr.mxu0 0.0
    %292 = vmatpush1.msra.mxu0 %v52
    %293 = vmatprep.subr.mxu0 0.0
    %294 = vmatpush1.msra.mxu0 %v53
    %295 = vmatprep.subr.mxu0 0.0
    %296 = vmatpush1.msra.mxu0 %v54
    %297 = vmatprep.subr.mxu0 0.0
    %298 = vmatpush1.msra.mxu0 %v55
    %299 = vmatprep.subr.mxu0 0.0
    %300 = vmatpush1.msra.mxu0 %v56
    %301 = vmatprep.subr.mxu0 0.0
    %302 = vmatpush1.msra.mxu0 %v57
    %303 = vmatprep.subr.mxu0 0.0
    %304 = vmatpush1.msra.mxu0 %v58
    %305 = vmatprep.subr.mxu0 0.0
    %306 = vmatpush1.msra.mxu0 %v59
    %307 = vmatprep.subr.mxu0 0.0
    %308 = vmatpush1.msra.mxu0 %v60
    %309 = vmatprep.subr.mxu0 0.0
    %310 = vmatpush1.msra.mxu0 %v61
    %311 = vmatprep.subr.mxu0 0.0
    %312 = vmatpush1.msra.mxu0 %v62
    %313 = vmatprep.subr.mxu0 0.0
    %314 = vmatpush1.msra.mxu0 %v63
    %315 = vmatprep.subr.mxu0 0.0
    %316 = vmatpush1.msra.mxu0 %v64
    %317 = vmatprep.subr.mxu0 0.0
    %318 = vmatpush1.msra.mxu0 %v65
    %319 = vmatprep.subr.mxu0 0.0
    %320 = vmatpush1.msra.mxu0 %v66
    %321 = vmatprep.subr.mxu0 0.0
    %322 = vmatpush1.msra.mxu0 %v67
    %323 = vmatprep.subr.mxu0 0.0
    %324 = vmatpush1.msra.mxu0 %v68
    %325 = vmatprep.subr.mxu0 0.0
    %326 = vmatpush1.msra.mxu0 %v69
    %327 = vmatprep.subr.mxu0 0.0
    %328 = vmatpush1.msra.mxu0 %v70
    %329 = vmatprep.mubr.f32.mxu0 %v190
    %330 = vmatmul.mubr.f32.gmra.mrb[0].mxu0 %v188
    %v331 = vpop.f32.mrb[0].mxu0
    %v332 = vadd.f32 0.0, %v331
    %v333 = vpop.f32.mrb[0].mxu0
    %334 = vdwg.mxu0
    %335 = vmatprep.subr.mxu0 0.0
    %336 = vmatpush1.msra.mxu0 %v71
    %337 = vmatprep.subr.mxu0 0.0
    %338 = vmatpush1.msra.mxu0 %v72
    %339 = vmatprep.subr.mxu0 0.0
    %340 = vmatpush1.msra.mxu0 %v73
    %341 = vmatprep.subr.mxu0 0.0
    %342 = vmatpush1.msra.mxu0 %v74
    %343 = vmatprep.subr.mxu0 0.0
    %344 = vmatpush1.msra.mxu0 %v75
    %345 = vmatprep.subr.mxu0 0.0
    %346 = vmatpush1.msra.mxu0 %v76
    %347 = vmatprep.subr.mxu0 0.0
    %348 = vmatpush1.msra.mxu0 %v77
    %349 = vmatprep.subr.mxu0 0.0
    %350 = vmatpush1.msra.mxu0 %v78
    %351 = vmatprep.subr.mxu0 0.0
    %352 = vmatpush1.msra.mxu0 %v79
    %353 = vmatprep.subr.mxu0 0.0
    %354 = vmatpush1.msra.mxu0 %v80
    %355 = vmatprep.subr.mxu0 0.0
    %356 = vmatpush1.msra.mxu0 %v81
    %357 = vmatprep.subr.mxu0 0.0
    %358 = vmatpush1.msra.mxu0 %v82
    %359 = vmatprep.subr.mxu0 0.0
    %360 = vmatpush1.msra.mxu0 %v83
    %361 = vmatprep.subr.mxu0 0.0
    %362 = vmatpush1.msra.mxu0 %v84
    %363 = vmatprep.subr.mxu0 0.0
    %364 = vmatpush1.msra.mxu0 %v85
    %365 = vmatprep.subr.mxu0 0.0
    %366 = vmatpush1.msra.mxu0 %v86
    %367 = vmatprep.subr.mxu0 0.0
    %368 = vmatpush1.msra.mxu0 %v87
    %369 = vmatprep.subr.mxu0 0.0
    %370 = vmatpush1.msra.mxu0 %v88
    %371 = vmatprep.subr.mxu0 0.0
    %372 = vmatpush1.msra.mxu0 %v89
    %373 = vmatprep.subr.mxu0 0.0
    %374 = vmatpush1.msra.mxu0 %v90
    %375 = vmatprep.subr.mxu0 0.0
    %376 = vmatpush1.msra.mxu0 %v91
    %377 = vmatprep.subr.mxu0 0.0
    %378 = vmatpush1.msra.mxu0 %v92
    %379 = vmatprep.subr.mxu0 0.0
    %380 = vmatpush1.msra.mxu0 %v93
    %381 = vmatprep.subr.mxu0 0.0
    %382 = vmatpush1.msra.mxu0 %v94
    %383 = vmatprep.subr.mxu0 0.0
    %384 = vmatpush1.msra.mxu0 %v95
    %385 = vmatprep.subr.mxu0 0.0
    %386 = vmatpush1.msra.mxu0 %v96
    %387 = vmatprep.subr.mxu0 0.0
    %388 = vmatpush1.msra.mxu0 %v97
    %389 = vmatprep.subr.mxu0 0.0
    %390 = vmatpush1.msra.mxu0 %v98
    %391 = vmatprep.subr.mxu0 0.0
    %392 = vmatpush1.msra.mxu0 %v99
    %393 = vmatprep.subr.mxu0 0.0
    %394 = vmatpush1.msra.mxu0 %v100
    %395 = vmatprep.subr.mxu0 0.0
    %396 = vmatpush1.msra.mxu0 %v101
    %397 = vmatprep.subr.mxu0 0.0
    %398 = vmatpush1.msra.mxu0 %v102
    %399 = vmatprep.mubr.f32.mxu0 %v261
    %400 = vmatmul.mubr.f32.gmra.mrb[0].mxu0 %v259
    %v401 = vpop.f32.mrb[0].mxu0
    %v402 = vadd.f32 %v332, %v401
    %v403 = vpop.f32.mrb[0].mxu0
    %404 = vdwg.mxu0
    %v405 = vmul.f32 %v188, %v188
    %v406 = vmul.f32 %v190, %v190
    %v407 = vmul.f32 %v259, %v259
    %v408 = vmul.f32 %v261, %v261
    %409 = vmatprep.subr.mxu0 0.0
    %410 = vmatpush1.msra.mxu0 %v39
    %411 = vmatprep.subr.mxu0 0.0
    %412 = vmatpush1.msra.mxu0 %v40
    %413 = vmatprep.subr.mxu0 0.0
    %414 = vmatpush1.msra.mxu0 %v41
    %415 = vmatprep.subr.mxu0 0.0
    %416 = vmatpush1.msra.mxu0 %v42
    %417 = vmatprep.subr.mxu0 0.0
    %418 = vmatpush1.msra.mxu0 %v43
    %419 = vmatprep.subr.mxu0 0.0
    %420 = vmatpush1.msra.mxu0 %v44
    %421 = vmatprep.subr.mxu0 0.0
    %422 = vmatpush1.msra.mxu0 %v45
    %423 = vmatprep.subr.mxu0 0.0
    %424 = vmatpush1.msra.mxu0 %v46
    %425 = vmatprep.subr.mxu0 0.0
    %426 = vmatpush1.msra.mxu0 %v47
    %427 = vmatprep.subr.mxu0 0.0
    %428 = vmatpush1.msra.mxu0 %v48
    %429 = vmatprep.subr.mxu0 0.0
    %430 = vmatpush1.msra.mxu0 %v49
    %431 = vmatprep.subr.mxu0 0.0
    %432 = vmatpush1.msra.mxu0 %v50
    %433 = vmatprep.subr.mxu0 0.0
    %434 = vmatpush1.msra.mxu0 %v51
    %435 = vmatprep.subr.mxu0 0.0
    %436 = vmatpush1.msra.mxu0 %v52
    %437 = vmatprep.subr.mxu0 0.0
    %438 = vmatpush1.msra.mxu0 %v53
    %439 = vmatprep.subr.mxu0 0.0
    %440 = vmatpush1.msra.mxu0 %v54
    %441 = vmatprep.subr.mxu0 0.0
    %442 = vmatpush1.msra.mxu0 %v55
    %443 = vmatprep.subr.mxu0 0.0
    %444 = vmatpush1.msra.mxu0 %v56
    %445 = vmatprep.subr.mxu0 0.0
    %446 = vmatpush1.msra.mxu0 %v57
    %447 = vmatprep.subr.mxu0 0.0
    %448 = vmatpush1.msra.mxu0 %v58
    %449 = vmatprep.subr.mxu0 0.0
    %450 = vmatpush1.msra.mxu0 %v59
    %451 = vmatprep.subr.mxu0 0.0
    %452 = vmatpush1.msra.mxu0 %v60
    %453 = vmatprep.subr.mxu0 0.0
    %454 = vmatpush1.msra.mxu0 %v61
    %455 = vmatprep.subr.mxu0 0.0
    %456 = vmatpush1.msra.mxu0 %v62
    %457 = vmatprep.subr.mxu0 0.0
    %458 = vmatpush1.msra.mxu0 %v63
    %459 = vmatprep.subr.mxu0 0.0
    %460 = vmatpush1.msra.mxu0 %v64
    %461 = vmatprep.subr.mxu0 0.0
    %462 = vmatpush1.msra.mxu0 %v65
    %463 = vmatprep.subr.mxu0 0.0
    %464 = vmatpush1.msra.mxu0 %v66
    %465 = vmatprep.subr.mxu0 0.0
    %466 = vmatpush1.msra.mxu0 %v67
    %467 = vmatprep.subr.mxu0 0.0
    %468 = vmatpush1.msra.mxu0 %v68
    %469 = vmatprep.subr.mxu0 0.0
    %470 = vmatpush1.msra.mxu0 %v69
    %471 = vmatprep.subr.mxu0 0.0
    %472 = vmatpush1.msra.mxu0 %v70
    %473 = vmatprep.mubr.f32.mxu0 %v406
    %474 = vmatmul.mubr.f32.gmra.mrb[0].mxu0 %v405
    %v475 = vpop.f32.mrb[0].mxu0
    %v476 = vadd.f32 0.0, %v475
    %v477 = vpop.f32.mrb[0].mxu0
    %478 = vdwg.mxu0
    %479 = vmatprep.subr.mxu0 0.0
    %480 = vmatpush1.msra.mxu0 %v71
    %481 = vmatprep.subr.mxu0 0.0
    %482 = vmatpush1.msra.mxu0 %v72
    %483 = vmatprep.subr.mxu0 0.0
    %484 = vmatpush1.msra.mxu0 %v73
    %485 = vmatprep.subr.mxu0 0.0
    %486 = vmatpush1.msra.mxu0 %v74
    %487 = vmatprep.subr.mxu0 0.0
    %488 = vmatpush1.msra.mxu0 %v75
    %489 = vmatprep.subr.mxu0 0.0
    %490 = vmatpush1.msra.mxu0 %v76
    %491 = vmatprep.subr.mxu0 0.0
    %492 = vmatpush1.msra.mxu0 %v77
    %493 = vmatprep.subr.mxu0 0.0
    %494 = vmatpush1.msra.mxu0 %v78
    %495 = vmatprep.subr.mxu0 0.0
    %496 = vmatpush1.msra.mxu0 %v79
    %497 = vmatprep.subr.mxu0 0.0
    %498 = vmatpush1.msra.mxu0 %v80
    %499 = vmatprep.subr.mxu0 0.0
    %500 = vmatpush1.msra.mxu0 %v81
    %501 = vmatprep.subr.mxu0 0.0
    %502 = vmatpush1.msra.mxu0 %v82
    %503 = vmatprep.subr.mxu0 0.0
    %504 = vmatpush1.msra.mxu0 %v83
    %505 = vmatprep.subr.mxu0 0.0
    %506 = vmatpush1.msra.mxu0 %v84
    %507 = vmatprep.subr.mxu0 0.0
    %508 = vmatpush1.msra.mxu0 %v85
    %509 = vmatprep.subr.mxu0 0.0
    %510 = vmatpush1.msra.mxu0 %v86
    %511 = vmatprep.subr.mxu0 0.0
    %512 = vmatpush1.msra.mxu0 %v87
    %513 = vmatprep.subr.mxu0 0.0
    %514 = vmatpush1.msra.mxu0 %v88
    %515 = vmatprep.subr.mxu0 0.0
    %516 = vmatpush1.msra.mxu0 %v89
    %517 = vmatprep.subr.mxu0 0.0
    %518 = vmatpush1.msra.mxu0 %v90
    %519 = vmatprep.subr.mxu0 0.0
    %520 = vmatpush1.msra.mxu0 %v91
    %521 = vmatprep.subr.mxu0 0.0
    %522 = vmatpush1.msra.mxu0 %v92
    %523 = vmatprep.subr.mxu0 0.0
    %524 = vmatpush1.msra.mxu0 %v93
    %525 = vmatprep.subr.mxu0 0.0
    %526 = vmatpush1.msra.mxu0 %v94
    %527 = vmatprep.subr.mxu0 0.0
    %528 = vmatpush1.msra.mxu0 %v95
    %529 = vmatprep.subr.mxu0 0.0
    %530 = vmatpush1.msra.mxu0 %v96
    %531 = vmatprep.subr.mxu0 0.0
    %532 = vmatpush1.msra.mxu0 %v97
    %533 = vmatprep.subr.mxu0 0.0
    %534 = vmatpush1.msra.mxu0 %v98
    %535 = vmatprep.subr.mxu0 0.0
    %536 = vmatpush1.msra.mxu0 %v99
    %537 = vmatprep.subr.mxu0 0.0
    %538 = vmatpush1.msra.mxu0 %v100
    %539 = vmatprep.subr.mxu0 0.0
    %540 = vmatpush1.msra.mxu0 %v101
    %541 = vmatprep.subr.mxu0 0.0
    %542 = vmatpush1.msra.mxu0 %v102
    %543 = vmatprep.mubr.f32.mxu0 %v408
    %544 = vmatmul.mubr.f32.gmra.mrb[0].mxu0 %v407
    %v545 = vpop.f32.mrb[0].mxu0
    %v546 = vadd.f32 %v476, %v545
    %v547 = vpop.f32.mrb[0].mxu0
    %548 = vdwg.mxu0
    %v549 = vmul.f32 %v402, %v402
    %v550 = vsub.f32 %v546, %v549
    %v551 = vmax.f32 %v550, 0.0
    %v552 = vadd.f32 %v551, 1e-05
    %v553 = vrsqrt.pop %v552
    %v554 = vmul.f32 %v263, %v553
    %v555 = vmul.f32 %v402, %v554
    %v556 = vsub.f32 %v264, %v555
    %558 = vset.pattern.permute.xlu0 0
    %559 = vperm.xlu0 %558, %v554
    %v560 = vpop.permute.xlu0 %559
    %v562 = vmul.f32 %v188, %v560
    %v563 = vmul.f32 %v190, %v560
    %v564 = vmul.f32 %v259, %v560
    %v565 = vmul.f32 %v261, %v560
    %567 = vset.pattern.permute.xlu0 0
    %568 = vperm.xlu0 %567, %v556
    %v569 = vpop.permute.xlu0 %568
    %v571 = vadd.f32 %v562, %v569
    %v572 = vadd.f32 %v563, %v569
    %v573 = vadd.f32 %v564, %v569
    %v574 = vadd.f32 %v565, %v569
    %v575 = vmax.f32 %v571, 0.0
    %v576 = vmax.f32 %v572, 0.0
    %v577 = vmax.f32 %v573, 0.0
    %v578 = vmax.f32 %v574, 0.0
    %579 = vrot.lane.b32.xlu0 %v575, 1
    %v580 = vpop.permute.xlu0 %579
    %581 = vrot.lane.b32.xlu0 %v576, 1
    %v582 = vpop.permute.xlu0 %581
    %583 = vrot.lane.b32.xlu0 %v577, 1
    %v584 = vpop.permute.xlu0 %583
    %585 = vrot.lane.b32.xlu0 %v578, 1
    %v586 = vpop.permute.xlu0 %585
    %v587 = vlaneseq
    %v588 = vand.u32 %v587, 127
    %vm589 = vcmp.lt.s32.totalorder %v588, 1
    %v590 = vsel %vm589, %v584, %v586
    %v591 = vsel %vm589, %v582, %v584
    %v592 = vsel %vm589, %v580, %v582
    %v593 = vsel %vm589, %v586, %v580
    %594 = vrot.lane.b32.xlu0 %v575, 127
    %v595 = vpop.permute.xlu0 %594
    %596 = vrot.lane.b32.xlu0 %v576, 127
    %v597 = vpop.permute.xlu0 %596
    %598 = vrot.lane.b32.xlu0 %v577, 127
    %v599 = vpop.permute.xlu0 %598
    %600 = vrot.lane.b32.xlu0 %v578, 127
    %v601 = vpop.permute.xlu0 %600
    %vm602 = vcmp.lt.s32.totalorder %v588, 127
    %v603 = vsel %vm602, %v599, %v601
    %v604 = vsel %vm602, %v597, %v599
    %v605 = vsel %vm602, %v595, %v597
    %v606 = vsel %vm602, %v601, %v595
    %v607 = vld [vmem:[%s5] sm:$0x3f]
    %v608 = vld [vmem:[%s5 + $0x8] sm:$0x3f]
    %v609 = vld [vmem:[%s5 + $0x10] sm:$0x3f]
    %v610 = vld [vmem:[%s5 + $0x18] sm:$0x3f]
    %v611 = vmul.f32 %v607, %v593
    %v612 = vmul.f32 %v608, %v592
    %v613 = vmul.f32 %v609, %v591
    %v614 = vmul.f32 %v610, %v590
    %s615 = scalar_lea.vmem %s5, 32
    %v616 = vld [vmem:[%s615] sm:$0x3f]
    %v617 = vld [vmem:[%s615 + $0x8] sm:$0x3f]
    %v618 = vld [vmem:[%s615 + $0x10] sm:$0x3f]
    %v619 = vld [vmem:[%s615 + $0x18] sm:$0x3f]
    %v620 = vmul.f32 %v616, %v575
    %v621 = vmul.f32 %v617, %v576
    %v622 = vmul.f32 %v618, %v577
    %v623 = vmul.f32 %v619, %v578
    %v624 = vadd.f32 %v611, %v620
    %v625 = vadd.f32 %v612, %v621
    %v626 = vadd.f32 %v613, %v622
    %v627 = vadd.f32 %v614, %v623
    %s628 = scalar_lea.vmem %s5, 64
    %v629 = vld [vmem:[%s628] sm:$0x3f]
    %v630 = vld [vmem:[%s628 + $0x8] sm:$0x3f]
    %v631 = vld [vmem:[%s628 + $0x10] sm:$0x3f]
    %v632 = vld [vmem:[%s628 + $0x18] sm:$0x3f]
    %v633 = vmul.f32 %v629, %v605
    %v634 = vmul.f32 %v630, %v604
    %v635 = vmul.f32 %v631, %v603
    %v636 = vmul.f32 %v632, %v606
    %v637 = vadd.f32 %v624, %v633
    %v638 = vadd.f32 %v625, %v634
    %v639 = vadd.f32 %v626, %v635
    %v640 = vadd.f32 %v627, %v636
    %s641 = scalar_lea.vmem %s5, 96
    %v642 = vld [vmem:[%s641] sm:$0x3f]
    %v643 = vld [vmem:[%s641 + $0x8] sm:$0x3f]
    %v644 = vld [vmem:[%s641 + $0x10] sm:$0x3f]
    %v645 = vld [vmem:[%s641 + $0x18] sm:$0x3f]
    %v646 = vmul.f32 %v642, %v593
    %v647 = vmul.f32 %v643, %v592
    %v648 = vmul.f32 %v644, %v591
    %v649 = vmul.f32 %v645, %v590
    %s650 = scalar_lea.vmem %s5, 128
    %v651 = vld [vmem:[%s650] sm:$0x3f]
    %v652 = vld [vmem:[%s650 + $0x8] sm:$0x3f]
    %v653 = vld [vmem:[%s650 + $0x10] sm:$0x3f]
    %v654 = vld [vmem:[%s650 + $0x18] sm:$0x3f]
    %v655 = vmul.f32 %v651, %v575
    %v656 = vmul.f32 %v652, %v576
    %v657 = vmul.f32 %v653, %v577
    %v658 = vmul.f32 %v654, %v578
    %v659 = vadd.f32 %v646, %v655
    %v660 = vadd.f32 %v647, %v656
    %v661 = vadd.f32 %v648, %v657
    %v662 = vadd.f32 %v649, %v658
    %s663 = scalar_lea.vmem %s5, 160
    %v664 = vld [vmem:[%s663] sm:$0x3f]
    %v665 = vld [vmem:[%s663 + $0x8] sm:$0x3f]
    %v666 = vld [vmem:[%s663 + $0x10] sm:$0x3f]
    %v667 = vld [vmem:[%s663 + $0x18] sm:$0x3f]
    %v668 = vmul.f32 %v664, %v605
    %v669 = vmul.f32 %v665, %v604
    %v670 = vmul.f32 %v666, %v603
    %v671 = vmul.f32 %v667, %v606
    %v672 = vadd.f32 %v659, %v668
    %v673 = vadd.f32 %v660, %v669
    %v674 = vadd.f32 %v661, %v670
    %v675 = vadd.f32 %v662, %v671
    %s676 = scalar_lea.vmem %s5, 192
    %v677 = vld [vmem:[%s676] sm:$0x3f]
    %v678 = vld [vmem:[%s676 + $0x8] sm:$0x3f]
    %v679 = vld [vmem:[%s676 + $0x10] sm:$0x3f]
    %v680 = vld [vmem:[%s676 + $0x18] sm:$0x3f]
    %v681 = vmul.f32 %v677, %v593
    %v682 = vmul.f32 %v678, %v592
    %v683 = vmul.f32 %v679, %v591
    %v684 = vmul.f32 %v680, %v590
    %s685 = scalar_lea.vmem %s5, 224
    %v686 = vld [vmem:[%s685] sm:$0x3f]
    %v687 = vld [vmem:[%s685 + $0x8] sm:$0x3f]
    %v688 = vld [vmem:[%s685 + $0x10] sm:$0x3f]
    %v689 = vld [vmem:[%s685 + $0x18] sm:$0x3f]
    %v690 = vmul.f32 %v686, %v575
    %v691 = vmul.f32 %v687, %v576
    %v692 = vmul.f32 %v688, %v577
    %v693 = vmul.f32 %v689, %v578
    %v694 = vadd.f32 %v681, %v690
    %v695 = vadd.f32 %v682, %v691
    %v696 = vadd.f32 %v683, %v692
    %v697 = vadd.f32 %v684, %v693
    %s698 = scalar_lea.vmem %s5, 256
    %v699 = vld [vmem:[%s698] sm:$0x3f]
    %v700 = vld [vmem:[%s698 + $0x8] sm:$0x3f]
    %v701 = vld [vmem:[%s698 + $0x10] sm:$0x3f]
    %v702 = vld [vmem:[%s698 + $0x18] sm:$0x3f]
    %v703 = vmul.f32 %v699, %v605
    %v704 = vmul.f32 %v700, %v604
    %v705 = vmul.f32 %v701, %v603
    %v706 = vmul.f32 %v702, %v606
    %v707 = vadd.f32 %v694, %v703
    %v708 = vadd.f32 %v695, %v704
    %v709 = vadd.f32 %v696, %v705
    %v710 = vadd.f32 %v697, %v706
    %711 = vrot.lane.b32.xlu0 %v637, 16
    %v712 = vpop.permute.xlu0 %711
    %713 = vrot.lane.b32.xlu0 %v638, 16
    %v714 = vpop.permute.xlu0 %713
    %715 = vrot.lane.b32.xlu0 %v639, 16
    %v716 = vpop.permute.xlu0 %715
    %717 = vrot.lane.b32.xlu0 %v640, 16
    %v718 = vpop.permute.xlu0 %717
    %vm719 = vcmp.lt.s32.totalorder %v588, 16
    %v720 = vsel %vm719, %v716, %v718
    %v721 = vsel %vm719, %v714, %v716
    %v722 = vsel %vm719, %v712, %v714
    %v723 = vsel %vm719, %v718, %v712
    %v724 = vadd.f32 %v723, %v672
    %v725 = vadd.f32 %v722, %v673
    %v726 = vadd.f32 %v721, %v674
    %v727 = vadd.f32 %v720, %v675
    %728 = vrot.lane.b32.xlu0 %v707, 112
    %v729 = vpop.permute.xlu0 %728
    %730 = vrot.lane.b32.xlu0 %v708, 112
    %v731 = vpop.permute.xlu0 %730
    %732 = vrot.lane.b32.xlu0 %v709, 112
    %v733 = vpop.permute.xlu0 %732
    %734 = vrot.lane.b32.xlu0 %v710, 112
    %v735 = vpop.permute.xlu0 %734
    %vm736 = vcmp.lt.s32.totalorder %v588, 112
    %v737 = vsel %vm736, %v733, %v735
    %v738 = vsel %vm736, %v731, %v733
    %v739 = vsel %vm736, %v729, %v731
    %v740 = vsel %vm736, %v735, %v729
    %v741 = vadd.f32 %v724, %v739
    %v742 = vadd.f32 %v725, %v738
    %v743 = vadd.f32 %v726, %v737
    %v744 = vadd.f32 %v727, %v740
    %v745 = vld [vmem:[%s6] sm:$0x3f]
    %v746 = vld [vmem:[%s7] sm:$0x3f]
    %747 = vmatprep.subr.mxu0 0.0
    %748 = vmatpush1.msra.mxu0 %v39
    %749 = vmatprep.subr.mxu0 0.0
    %750 = vmatpush1.msra.mxu0 %v40
    %751 = vmatprep.subr.mxu0 0.0
    %752 = vmatpush1.msra.mxu0 %v41
    %753 = vmatprep.subr.mxu0 0.0
    %754 = vmatpush1.msra.mxu0 %v42
    %755 = vmatprep.subr.mxu0 0.0
    %756 = vmatpush1.msra.mxu0 %v43
    %757 = vmatprep.subr.mxu0 0.0
    %758 = vmatpush1.msra.mxu0 %v44
    %759 = vmatprep.subr.mxu0 0.0
    %760 = vmatpush1.msra.mxu0 %v45
    %761 = vmatprep.subr.mxu0 0.0
    %762 = vmatpush1.msra.mxu0 %v46
    %763 = vmatprep.subr.mxu0 0.0
    %764 = vmatpush1.msra.mxu0 %v47
    %765 = vmatprep.subr.mxu0 0.0
    %766 = vmatpush1.msra.mxu0 %v48
    %767 = vmatprep.subr.mxu0 0.0
    %768 = vmatpush1.msra.mxu0 %v49
    %769 = vmatprep.subr.mxu0 0.0
    %770 = vmatpush1.msra.mxu0 %v50
    %771 = vmatprep.subr.mxu0 0.0
    %772 = vmatpush1.msra.mxu0 %v51
    %773 = vmatprep.subr.mxu0 0.0
    %774 = vmatpush1.msra.mxu0 %v52
    %775 = vmatprep.subr.mxu0 0.0
    %776 = vmatpush1.msra.mxu0 %v53
    %777 = vmatprep.subr.mxu0 0.0
    %778 = vmatpush1.msra.mxu0 %v54
    %779 = vmatprep.subr.mxu0 0.0
    %780 = vmatpush1.msra.mxu0 %v55
    %781 = vmatprep.subr.mxu0 0.0
    %782 = vmatpush1.msra.mxu0 %v56
    %783 = vmatprep.subr.mxu0 0.0
    %784 = vmatpush1.msra.mxu0 %v57
    %785 = vmatprep.subr.mxu0 0.0
    %786 = vmatpush1.msra.mxu0 %v58
    %787 = vmatprep.subr.mxu0 0.0
    %788 = vmatpush1.msra.mxu0 %v59
    %789 = vmatprep.subr.mxu0 0.0
    %790 = vmatpush1.msra.mxu0 %v60
    %791 = vmatprep.subr.mxu0 0.0
    %792 = vmatpush1.msra.mxu0 %v61
    %793 = vmatprep.subr.mxu0 0.0
    %794 = vmatpush1.msra.mxu0 %v62
    %795 = vmatprep.subr.mxu0 0.0
    %796 = vmatpush1.msra.mxu0 %v63
    %797 = vmatprep.subr.mxu0 0.0
    %798 = vmatpush1.msra.mxu0 %v64
    %799 = vmatprep.subr.mxu0 0.0
    %800 = vmatpush1.msra.mxu0 %v65
    %801 = vmatprep.subr.mxu0 0.0
    %802 = vmatpush1.msra.mxu0 %v66
    %803 = vmatprep.subr.mxu0 0.0
    %804 = vmatpush1.msra.mxu0 %v67
    %805 = vmatprep.subr.mxu0 0.0
    %806 = vmatpush1.msra.mxu0 %v68
    %807 = vmatprep.subr.mxu0 0.0
    %808 = vmatpush1.msra.mxu0 %v69
    %809 = vmatprep.subr.mxu0 0.0
    %810 = vmatpush1.msra.mxu0 %v70
    %811 = vmatprep.mubr.f32.mxu0 %v742
    %812 = vmatmul.mubr.f32.gmra.mrb[0].mxu0 %v741
    %v813 = vpop.f32.mrb[0].mxu0
    %v814 = vadd.f32 0.0, %v813
    %v815 = vpop.f32.mrb[0].mxu0
    %816 = vdwg.mxu0
    %817 = vmatprep.subr.mxu0 0.0
    %818 = vmatpush1.msra.mxu0 %v71
    %819 = vmatprep.subr.mxu0 0.0
    %820 = vmatpush1.msra.mxu0 %v72
    %821 = vmatprep.subr.mxu0 0.0
    %822 = vmatpush1.msra.mxu0 %v73
    %823 = vmatprep.subr.mxu0 0.0
    %824 = vmatpush1.msra.mxu0 %v74
    %825 = vmatprep.subr.mxu0 0.0
    %826 = vmatpush1.msra.mxu0 %v75
    %827 = vmatprep.subr.mxu0 0.0
    %828 = vmatpush1.msra.mxu0 %v76
    %829 = vmatprep.subr.mxu0 0.0
    %830 = vmatpush1.msra.mxu0 %v77
    %831 = vmatprep.subr.mxu0 0.0
    %832 = vmatpush1.msra.mxu0 %v78
    %833 = vmatprep.subr.mxu0 0.0
    %834 = vmatpush1.msra.mxu0 %v79
    %835 = vmatprep.subr.mxu0 0.0
    %836 = vmatpush1.msra.mxu0 %v80
    %837 = vmatprep.subr.mxu0 0.0
    %838 = vmatpush1.msra.mxu0 %v81
    %839 = vmatprep.subr.mxu0 0.0
    %840 = vmatpush1.msra.mxu0 %v82
    %841 = vmatprep.subr.mxu0 0.0
    %842 = vmatpush1.msra.mxu0 %v83
    %843 = vmatprep.subr.mxu0 0.0
    %844 = vmatpush1.msra.mxu0 %v84
    %845 = vmatprep.subr.mxu0 0.0
    %846 = vmatpush1.msra.mxu0 %v85
    %847 = vmatprep.subr.mxu0 0.0
    %848 = vmatpush1.msra.mxu0 %v86
    %849 = vmatprep.subr.mxu0 0.0
    %850 = vmatpush1.msra.mxu0 %v87
    %851 = vmatprep.subr.mxu0 0.0
    %852 = vmatpush1.msra.mxu0 %v88
    %853 = vmatprep.subr.mxu0 0.0
    %854 = vmatpush1.msra.mxu0 %v89
    %855 = vmatprep.subr.mxu0 0.0
    %856 = vmatpush1.msra.mxu0 %v90
    %857 = vmatprep.subr.mxu0 0.0
    %858 = vmatpush1.msra.mxu0 %v91
    %859 = vmatprep.subr.mxu0 0.0
    %860 = vmatpush1.msra.mxu0 %v92
    %861 = vmatprep.subr.mxu0 0.0
    %862 = vmatpush1.msra.mxu0 %v93
    %863 = vmatprep.subr.mxu0 0.0
    %864 = vmatpush1.msra.mxu0 %v94
    %865 = vmatprep.subr.mxu0 0.0
    %866 = vmatpush1.msra.mxu0 %v95
    %867 = vmatprep.subr.mxu0 0.0
    %868 = vmatpush1.msra.mxu0 %v96
    %869 = vmatprep.subr.mxu0 0.0
    %870 = vmatpush1.msra.mxu0 %v97
    %871 = vmatprep.subr.mxu0 0.0
    %872 = vmatpush1.msra.mxu0 %v98
    %873 = vmatprep.subr.mxu0 0.0
    %874 = vmatpush1.msra.mxu0 %v99
    %875 = vmatprep.subr.mxu0 0.0
    %876 = vmatpush1.msra.mxu0 %v100
    %877 = vmatprep.subr.mxu0 0.0
    %878 = vmatpush1.msra.mxu0 %v101
    %879 = vmatprep.subr.mxu0 0.0
    %880 = vmatpush1.msra.mxu0 %v102
    %881 = vmatprep.mubr.f32.mxu0 %v744
    %882 = vmatmul.mubr.f32.gmra.mrb[0].mxu0 %v743
    %v883 = vpop.f32.mrb[0].mxu0
    %v884 = vadd.f32 %v814, %v883
    %v885 = vpop.f32.mrb[0].mxu0
    %886 = vdwg.mxu0
    %v887 = vmul.f32 %v741, %v741
    %v888 = vmul.f32 %v742, %v742
    %v889 = vmul.f32 %v743, %v743
    %v890 = vmul.f32 %v744, %v744
    %891 = vmatprep.subr.mxu0 0.0
    %892 = vmatpush1.msra.mxu0 %v39
    %893 = vmatprep.subr.mxu0 0.0
    %894 = vmatpush1.msra.mxu0 %v40
    %895 = vmatprep.subr.mxu0 0.0
    %896 = vmatpush1.msra.mxu0 %v41
    %897 = vmatprep.subr.mxu0 0.0
    %898 = vmatpush1.msra.mxu0 %v42
    %899 = vmatprep.subr.mxu0 0.0
    %900 = vmatpush1.msra.mxu0 %v43
    %901 = vmatprep.subr.mxu0 0.0
    %902 = vmatpush1.msra.mxu0 %v44
    %903 = vmatprep.subr.mxu0 0.0
    %904 = vmatpush1.msra.mxu0 %v45
    %905 = vmatprep.subr.mxu0 0.0
    %906 = vmatpush1.msra.mxu0 %v46
    %907 = vmatprep.subr.mxu0 0.0
    %908 = vmatpush1.msra.mxu0 %v47
    %909 = vmatprep.subr.mxu0 0.0
    %910 = vmatpush1.msra.mxu0 %v48
    %911 = vmatprep.subr.mxu0 0.0
    %912 = vmatpush1.msra.mxu0 %v49
    %913 = vmatprep.subr.mxu0 0.0
    %914 = vmatpush1.msra.mxu0 %v50
    %915 = vmatprep.subr.mxu0 0.0
    %916 = vmatpush1.msra.mxu0 %v51
    %917 = vmatprep.subr.mxu0 0.0
    %918 = vmatpush1.msra.mxu0 %v52
    %919 = vmatprep.subr.mxu0 0.0
    %920 = vmatpush1.msra.mxu0 %v53
    %921 = vmatprep.subr.mxu0 0.0
    %922 = vmatpush1.msra.mxu0 %v54
    %923 = vmatprep.subr.mxu0 0.0
    %924 = vmatpush1.msra.mxu0 %v55
    %925 = vmatprep.subr.mxu0 0.0
    %926 = vmatpush1.msra.mxu0 %v56
    %927 = vmatprep.subr.mxu0 0.0
    %928 = vmatpush1.msra.mxu0 %v57
    %929 = vmatprep.subr.mxu0 0.0
    %930 = vmatpush1.msra.mxu0 %v58
    %931 = vmatprep.subr.mxu0 0.0
    %932 = vmatpush1.msra.mxu0 %v59
    %933 = vmatprep.subr.mxu0 0.0
    %934 = vmatpush1.msra.mxu0 %v60
    %935 = vmatprep.subr.mxu0 0.0
    %936 = vmatpush1.msra.mxu0 %v61
    %937 = vmatprep.subr.mxu0 0.0
    %938 = vmatpush1.msra.mxu0 %v62
    %939 = vmatprep.subr.mxu0 0.0
    %940 = vmatpush1.msra.mxu0 %v63
    %941 = vmatprep.subr.mxu0 0.0
    %942 = vmatpush1.msra.mxu0 %v64
    %943 = vmatprep.subr.mxu0 0.0
    %944 = vmatpush1.msra.mxu0 %v65
    %945 = vmatprep.subr.mxu0 0.0
    %946 = vmatpush1.msra.mxu0 %v66
    %947 = vmatprep.subr.mxu0 0.0
    %948 = vmatpush1.msra.mxu0 %v67
    %949 = vmatprep.subr.mxu0 0.0
    %950 = vmatpush1.msra.mxu0 %v68
    %951 = vmatprep.subr.mxu0 0.0
    %952 = vmatpush1.msra.mxu0 %v69
    %953 = vmatprep.subr.mxu0 0.0
    %954 = vmatpush1.msra.mxu0 %v70
    %955 = vmatprep.mubr.f32.mxu0 %v888
    %956 = vmatmul.mubr.f32.gmra.mrb[0].mxu0 %v887
    %v957 = vpop.f32.mrb[0].mxu0
    %v958 = vadd.f32 0.0, %v957
    %v959 = vpop.f32.mrb[0].mxu0
    %960 = vdwg.mxu0
    %961 = vmatprep.subr.mxu0 0.0
    %962 = vmatpush1.msra.mxu0 %v71
    %963 = vmatprep.subr.mxu0 0.0
    %964 = vmatpush1.msra.mxu0 %v72
    %965 = vmatprep.subr.mxu0 0.0
    %966 = vmatpush1.msra.mxu0 %v73
    %967 = vmatprep.subr.mxu0 0.0
    %968 = vmatpush1.msra.mxu0 %v74
    %969 = vmatprep.subr.mxu0 0.0
    %970 = vmatpush1.msra.mxu0 %v75
    %971 = vmatprep.subr.mxu0 0.0
    %972 = vmatpush1.msra.mxu0 %v76
    %973 = vmatprep.subr.mxu0 0.0
    %974 = vmatpush1.msra.mxu0 %v77
    %975 = vmatprep.subr.mxu0 0.0
    %976 = vmatpush1.msra.mxu0 %v78
    %977 = vmatprep.subr.mxu0 0.0
    %978 = vmatpush1.msra.mxu0 %v79
    %979 = vmatprep.subr.mxu0 0.0
    %980 = vmatpush1.msra.mxu0 %v80
    %981 = vmatprep.subr.mxu0 0.0
    %982 = vmatpush1.msra.mxu0 %v81
    %983 = vmatprep.subr.mxu0 0.0
    %984 = vmatpush1.msra.mxu0 %v82
    %985 = vmatprep.subr.mxu0 0.0
    %986 = vmatpush1.msra.mxu0 %v83
    %987 = vmatprep.subr.mxu0 0.0
    %988 = vmatpush1.msra.mxu0 %v84
    %989 = vmatprep.subr.mxu0 0.0
    %990 = vmatpush1.msra.mxu0 %v85
    %991 = vmatprep.subr.mxu0 0.0
    %992 = vmatpush1.msra.mxu0 %v86
    %993 = vmatprep.subr.mxu0 0.0
    %994 = vmatpush1.msra.mxu0 %v87
    %995 = vmatprep.subr.mxu0 0.0
    %996 = vmatpush1.msra.mxu0 %v88
    %997 = vmatprep.subr.mxu0 0.0
    %998 = vmatpush1.msra.mxu0 %v89
    %999 = vmatprep.subr.mxu0 0.0
    %1000 = vmatpush1.msra.mxu0 %v90
    %1001 = vmatprep.subr.mxu0 0.0
    %1002 = vmatpush1.msra.mxu0 %v91
    %1003 = vmatprep.subr.mxu0 0.0
    %1004 = vmatpush1.msra.mxu0 %v92
    %1005 = vmatprep.subr.mxu0 0.0
    %1006 = vmatpush1.msra.mxu0 %v93
    %1007 = vmatprep.subr.mxu0 0.0
    %1008 = vmatpush1.msra.mxu0 %v94
    %1009 = vmatprep.subr.mxu0 0.0
    %1010 = vmatpush1.msra.mxu0 %v95
    %1011 = vmatprep.subr.mxu0 0.0
    %1012 = vmatpush1.msra.mxu0 %v96
    %1013 = vmatprep.subr.mxu0 0.0
    %1014 = vmatpush1.msra.mxu0 %v97
    %1015 = vmatprep.subr.mxu0 0.0
    %1016 = vmatpush1.msra.mxu0 %v98
    %1017 = vmatprep.subr.mxu0 0.0
    %1018 = vmatpush1.msra.mxu0 %v99
    %1019 = vmatprep.subr.mxu0 0.0
    %1020 = vmatpush1.msra.mxu0 %v100
    %1021 = vmatprep.subr.mxu0 0.0
    %1022 = vmatpush1.msra.mxu0 %v101
    %1023 = vmatprep.subr.mxu0 0.0
    %1024 = vmatpush1.msra.mxu0 %v102
    %1025 = vmatprep.mubr.f32.mxu0 %v890
    %1026 = vmatmul.mubr.f32.gmra.mrb[0].mxu0 %v889
    %v1027 = vpop.f32.mrb[0].mxu0
    %v1028 = vadd.f32 %v958, %v1027
    %v1029 = vpop.f32.mrb[0].mxu0
    %1030 = vdwg.mxu0
    %v1031 = vmul.f32 %v884, %v884
    %v1032 = vsub.f32 %v1028, %v1031
    %v1033 = vmax.f32 %v1032, 0.0
    %v1034 = vadd.f32 %v1033, 1e-05
    %v1035 = vrsqrt.pop %v1034
    %v1036 = vmul.f32 %v745, %v1035
    %v1037 = vmul.f32 %v884, %v1036
    %v1038 = vsub.f32 %v746, %v1037
    %1040 = vset.pattern.permute.xlu0 0
    %1041 = vperm.xlu0 %1040, %v1036
    %v1042 = vpop.permute.xlu0 %1041
    %v1044 = vmul.f32 %v741, %v1042
    %v1045 = vmul.f32 %v742, %v1042
    %v1046 = vmul.f32 %v743, %v1042
    %v1047 = vmul.f32 %v744, %v1042
    %1049 = vset.pattern.permute.xlu0 0
    %1050 = vperm.xlu0 %1049, %v1038
    %v1051 = vpop.permute.xlu0 %1050
    %v1053 = vadd.f32 %v1044, %v1051
    %v1054 = vadd.f32 %v1045, %v1051
    %v1055 = vadd.f32 %v1046, %v1051
    %v1056 = vadd.f32 %v1047, %v1051
    %v1057 = vld [vmem:[%s8] sm:$0xff]
    %v1058 = vld [vmem:[%s8 + $0x8] sm:$0xff]
    %v1059 = vld [vmem:[%s8 + $0x10] sm:$0xff]
    %vm1060 = vcmask 48128
    %v1062 = vsel %vm1060, %v1057, 0
    %v1065 = vsel %vm1060, %v1058, 0
    %v1068 = vsel %vm1060, %v1059, 0
    %vm1070 = vcmask 1045504
    %v1072 = vsel %vm1070, %v1053, 0
    %v1075 = vsel %vm1070, %v1054, 0
    %v1078 = vsel %vm1070, %v1055, 0
    %v1081 = vsel %vm1070, %v1056, 0
    %1083 = vmatprep.subr.mxu0 %v1075
    %1084 = vmatpush1.msra.mxu0 %v1072
    %1085 = vmatprep.subr.mxu0 0.0
    %1086 = vmatpush1.msra.mxu0 0.0
    %1087 = vmatprep.subr.mxu0 0.0
    %1088 = vmatpush1.msra.mxu0 0.0
    %1089 = vmatprep.subr.mxu0 0.0
    %1090 = vmatpush1.msra.mxu0 0.0
    %1091 = vmatprep.subr.mxu0 0.0
    %1092 = vmatpush1.msra.mxu0 0.0
    %1093 = vmatprep.subr.mxu0 0.0
    %1094 = vmatpush1.msra.mxu0 0.0
    %1095 = vmatprep.subr.mxu0 0.0
    %1096 = vmatpush1.msra.mxu0 0.0
    %1097 = vmatprep.subr.mxu0 0.0
    %1098 = vmatpush1.msra.mxu0 0.0
    %1099 = vmatprep.subr.mxu0 0.0
    %1100 = vmatpush1.msra.mxu0 0.0
    %1101 = vmatprep.subr.mxu0 0.0
    %1102 = vmatpush1.msra.mxu0 0.0
    %1103 = vmatprep.subr.mxu0 0.0
    %1104 = vmatpush1.msra.mxu0 0.0
    %1105 = vmatprep.subr.mxu0 0.0
    %1106 = vmatpush1.msra.mxu0 0.0
    %1107 = vmatprep.subr.mxu0 0.0
    %1108 = vmatpush1.msra.mxu0 0.0
    %1109 = vmatprep.subr.mxu0 0.0
    %1110 = vmatpush1.msra.mxu0 0.0
    %1111 = vmatprep.subr.mxu0 0.0
    %1112 = vmatpush1.msra.mxu0 0.0
    %1113 = vmatprep.subr.mxu0 0.0
    %1114 = vmatpush1.msra.mxu0 0.0
    %1115 = vmatprep.subr.mxu0 0.0
    %1116 = vmatpush1.msra.mxu0 0.0
    %1117 = vmatprep.subr.mxu0 0.0
    %1118 = vmatpush1.msra.mxu0 0.0
    %1119 = vmatprep.subr.mxu0 0.0
    %1120 = vmatpush1.msra.mxu0 0.0
    %1121 = vmatprep.subr.mxu0 0.0
    %1122 = vmatpush1.msra.mxu0 0.0
    %1123 = vmatprep.subr.mxu0 0.0
    %1124 = vmatpush1.msra.mxu0 0.0
    %1125 = vmatprep.subr.mxu0 0.0
    %1126 = vmatpush1.msra.mxu0 0.0
    %1127 = vmatprep.subr.mxu0 0.0
    %1128 = vmatpush1.msra.mxu0 0.0
    %1129 = vmatprep.subr.mxu0 0.0
    %1130 = vmatpush1.msra.mxu0 0.0
    %1131 = vmatprep.subr.mxu0 0.0
    %1132 = vmatpush1.msra.mxu0 0.0
    %1133 = vmatprep.subr.mxu0 0.0
    %1134 = vmatpush1.msra.mxu0 0.0
    %1135 = vmatprep.subr.mxu0 0.0
    %1136 = vmatpush1.msra.mxu0 0.0
    %1137 = vmatprep.subr.mxu0 0.0
    %1138 = vmatpush1.msra.mxu0 0.0
    %1139 = vmatprep.subr.mxu0 0.0
    %1140 = vmatpush1.msra.mxu0 0.0
    %1141 = vmatprep.subr.mxu0 0.0
    %1142 = vmatpush1.msra.mxu0 0.0
    %1143 = vmatprep.subr.mxu0 0.0
    %1144 = vmatpush1.msra.mxu0 0.0
    %1145 = vmatprep.subr.mxu0 0.0
    %1146 = vmatpush1.msra.mxu0 0.0
    %1147 = vmatprep.mubr.f32.mxu0 0.0
    %1148 = vmatmul.mubr.f32.gmra.mrb[0].mxu0 %v1062
    %v1149 = vpop.f32.mrb[0].mxu0
    %v1150 = vadd.f32 0.0, %v1149
    %v1151 = vpop.f32.mrb[0].mxu0
    %v1152 = vadd.f32 0.0, %v1151
    %1153 = vmatprep.mubr.f32.mxu0 0.0
    %1154 = vmatmul.mubr.f32.gmra.mrb[0].mxu0 %v1065
    %v1155 = vpop.f32.mrb[0].mxu0
    %v1156 = vadd.f32 0.0, %v1155
    %v1157 = vpop.f32.mrb[0].mxu0
    %v1158 = vadd.f32 0.0, %v1157
    %1159 = vmatprep.mubr.f32.mxu0 0.0
    %1160 = vmatmul.mubr.f32.gmra.mrb[0].mxu0 %v1068
    %v1161 = vpop.f32.mrb[0].mxu0
    %v1162 = vadd.f32 0.0, %v1161
    %v1163 = vpop.f32.mrb[0].mxu0
    %v1164 = vadd.f32 0.0, %v1163
    %1165 = vdwg.mxu0
    %1166 = vmatprep.subr.mxu0 %v1081
    %1167 = vmatpush1.msra.mxu0 %v1078
    %1168 = vmatprep.subr.mxu0 0.0
    %1169 = vmatpush1.msra.mxu0 0.0
    %1170 = vmatprep.subr.mxu0 0.0
    %1171 = vmatpush1.msra.mxu0 0.0
    %1172 = vmatprep.subr.mxu0 0.0
    %1173 = vmatpush1.msra.mxu0 0.0
    %1174 = vmatprep.subr.mxu0 0.0
    %1175 = vmatpush1.msra.mxu0 0.0
    %1176 = vmatprep.subr.mxu0 0.0
    %1177 = vmatpush1.msra.mxu0 0.0
    %1178 = vmatprep.subr.mxu0 0.0
    %1179 = vmatpush1.msra.mxu0 0.0
    %1180 = vmatprep.subr.mxu0 0.0
    %1181 = vmatpush1.msra.mxu0 0.0
    %1182 = vmatprep.subr.mxu0 0.0
    %1183 = vmatpush1.msra.mxu0 0.0
    %1184 = vmatprep.subr.mxu0 0.0
    %1185 = vmatpush1.msra.mxu0 0.0
    %1186 = vmatprep.subr.mxu0 0.0
    %1187 = vmatpush1.msra.mxu0 0.0
    %1188 = vmatprep.subr.mxu0 0.0
    %1189 = vmatpush1.msra.mxu0 0.0
    %1190 = vmatprep.subr.mxu0 0.0
    %1191 = vmatpush1.msra.mxu0 0.0
    %1192 = vmatprep.subr.mxu0 0.0
    %1193 = vmatpush1.msra.mxu0 0.0
    %1194 = vmatprep.subr.mxu0 0.0
    %1195 = vmatpush1.msra.mxu0 0.0
    %1196 = vmatprep.subr.mxu0 0.0
    %1197 = vmatpush1.msra.mxu0 0.0
    %1198 = vmatprep.subr.mxu0 0.0
    %1199 = vmatpush1.msra.mxu0 0.0
    %1200 = vmatprep.subr.mxu0 0.0
    %1201 = vmatpush1.msra.mxu0 0.0
    %1202 = vmatprep.subr.mxu0 0.0
    %1203 = vmatpush1.msra.mxu0 0.0
    %1204 = vmatprep.subr.mxu0 0.0
    %1205 = vmatpush1.msra.mxu0 0.0
    %1206 = vmatprep.subr.mxu0 0.0
    %1207 = vmatpush1.msra.mxu0 0.0
    %1208 = vmatprep.subr.mxu0 0.0
    %1209 = vmatpush1.msra.mxu0 0.0
    %1210 = vmatprep.subr.mxu0 0.0
    %1211 = vmatpush1.msra.mxu0 0.0
    %1212 = vmatprep.subr.mxu0 0.0
    %1213 = vmatpush1.msra.mxu0 0.0
    %1214 = vmatprep.subr.mxu0 0.0
    %1215 = vmatpush1.msra.mxu0 0.0
    %1216 = vmatprep.subr.mxu0 0.0
    %1217 = vmatpush1.msra.mxu0 0.0
    %1218 = vmatprep.subr.mxu0 0.0
    %1219 = vmatpush1.msra.mxu0 0.0
    %1220 = vmatprep.subr.mxu0 0.0
    %1221 = vmatpush1.msra.mxu0 0.0
    %1222 = vmatprep.subr.mxu0 0.0
    %1223 = vmatpush1.msra.mxu0 0.0
    %1224 = vmatprep.subr.mxu0 0.0
    %1225 = vmatpush1.msra.mxu0 0.0
    %1226 = vmatprep.subr.mxu0 0.0
    %1227 = vmatpush1.msra.mxu0 0.0
    %1228 = vmatprep.subr.mxu0 0.0
    %1229 = vmatpush1.msra.mxu0 0.0
    %1230 = vmatprep.mubr.f32.mxu0 0.0
    %1231 = vmatmul.mubr.f32.gmra.mrb[0].mxu0 %v1062
    %v1232 = vpop.f32.mrb[0].mxu0
    %v1233 = vadd.f32 0.0, %v1232
    %v1234 = vpop.f32.mrb[0].mxu0
    %v1235 = vadd.f32 0.0, %v1234
    %1236 = vmatprep.mubr.f32.mxu0 0.0
    %1237 = vmatmul.mubr.f32.gmra.mrb[0].mxu0 %v1065
    %v1238 = vpop.f32.mrb[0].mxu0
    %v1239 = vadd.f32 0.0, %v1238
    %v1240 = vpop.f32.mrb[0].mxu0
    %v1241 = vadd.f32 0.0, %v1240
    %1242 = vmatprep.mubr.f32.mxu0 0.0
    %1243 = vmatmul.mubr.f32.gmra.mrb[0].mxu0 %v1068
    %v1244 = vpop.f32.mrb[0].mxu0
    %v1245 = vadd.f32 0.0, %v1244
    %v1246 = vpop.f32.mrb[0].mxu0
    %v1247 = vadd.f32 0.0, %v1246
    %1248 = vdwg.mxu0
    %v1249 = vld [vmem:[%s9] sm:$0xff]
    %v1250 = vld [vmem:[%s9 + $0x8] sm:$0xff]
    %v1251 = vld [vmem:[%s9 + $0x10] sm:$0xff]
    %v1252 = vld [vmem:[%s10] sm:$0xff]
    %v1253 = vld [vmem:[%s10 + $0x8] sm:$0xff]
    %v1254 = vld [vmem:[%s10 + $0x10] sm:$0xff]
    %1255 = vmatprep.subr.mxu0 0.0
    %1256 = vmatpush1.msra.mxu0 %v39
    %1257 = vmatprep.subr.mxu0 0.0
    %1258 = vmatpush1.msra.mxu0 %v40
    %1259 = vmatprep.subr.mxu0 0.0
    %1260 = vmatpush1.msra.mxu0 %v41
    %1261 = vmatprep.subr.mxu0 0.0
    %1262 = vmatpush1.msra.mxu0 %v42
    %1263 = vmatprep.subr.mxu0 0.0
    %1264 = vmatpush1.msra.mxu0 %v43
    %1265 = vmatprep.subr.mxu0 0.0
    %1266 = vmatpush1.msra.mxu0 %v44
    %1267 = vmatprep.subr.mxu0 0.0
    %1268 = vmatpush1.msra.mxu0 %v45
    %1269 = vmatprep.subr.mxu0 0.0
    %1270 = vmatpush1.msra.mxu0 %v46
    %1271 = vmatprep.subr.mxu0 0.0
    %1272 = vmatpush1.msra.mxu0 %v47
    %1273 = vmatprep.subr.mxu0 0.0
    %1274 = vmatpush1.msra.mxu0 %v48
    %1275 = vmatprep.subr.mxu0 0.0
    %1276 = vmatpush1.msra.mxu0 %v49
    %1277 = vmatprep.subr.mxu0 0.0
    %1278 = vmatpush1.msra.mxu0 %v50
    %1279 = vmatprep.subr.mxu0 0.0
    %1280 = vmatpush1.msra.mxu0 %v51
    %1281 = vmatprep.subr.mxu0 0.0
    %1282 = vmatpush1.msra.mxu0 %v52
    %1283 = vmatprep.subr.mxu0 0.0
    %1284 = vmatpush1.msra.mxu0 %v53
    %1285 = vmatprep.subr.mxu0 0.0
    %1286 = vmatpush1.msra.mxu0 %v54
    %1287 = vmatprep.subr.mxu0 0.0
    %1288 = vmatpush1.msra.mxu0 %v55
    %1289 = vmatprep.subr.mxu0 0.0
    %1290 = vmatpush1.msra.mxu0 %v56
    %1291 = vmatprep.subr.mxu0 0.0
    %1292 = vmatpush1.msra.mxu0 %v57
    %1293 = vmatprep.subr.mxu0 0.0
    %1294 = vmatpush1.msra.mxu0 %v58
    %1295 = vmatprep.subr.mxu0 0.0
    %1296 = vmatpush1.msra.mxu0 %v59
    %1297 = vmatprep.subr.mxu0 0.0
    %1298 = vmatpush1.msra.mxu0 %v60
    %1299 = vmatprep.subr.mxu0 0.0
    %1300 = vmatpush1.msra.mxu0 %v61
    %1301 = vmatprep.subr.mxu0 0.0
    %1302 = vmatpush1.msra.mxu0 %v62
    %1303 = vmatprep.subr.mxu0 0.0
    %1304 = vmatpush1.msra.mxu0 %v63
    %1305 = vmatprep.subr.mxu0 0.0
    %1306 = vmatpush1.msra.mxu0 %v64
    %1307 = vmatprep.subr.mxu0 0.0
    %1308 = vmatpush1.msra.mxu0 %v65
    %1309 = vmatprep.subr.mxu0 0.0
    %1310 = vmatpush1.msra.mxu0 %v66
    %1311 = vmatprep.subr.mxu0 0.0
    %1312 = vmatpush1.msra.mxu0 %v67
    %1313 = vmatprep.subr.mxu0 0.0
    %1314 = vmatpush1.msra.mxu0 %v68
    %1315 = vmatprep.subr.mxu0 0.0
    %1316 = vmatpush1.msra.mxu0 %v69
    %1317 = vmatprep.subr.mxu0 0.0
    %1318 = vmatpush1.msra.mxu0 %v70
    %1319 = vmatprep.mubr.f32.mxu0 %v1152
    %1320 = vmatmul.mubr.f32.gmra.mrb[0].mxu0 %v1150
    %v1321 = vpop.f32.mrb[0].mxu0
    %v1322 = vadd.f32 0.0, %v1321
    %v1323 = vpop.f32.mrb[0].mxu0
    %1324 = vmatprep.mubr.f32.mxu0 %v1158
    %1325 = vmatmul.mubr.f32.gmra.mrb[0].mxu0 %v1156
    %v1326 = vpop.f32.mrb[0].mxu0
    %v1327 = vadd.f32 0.0, %v1326
    %v1328 = vpop.f32.mrb[0].mxu0
    %1329 = vmatprep.mubr.f32.mxu0 %v1164
    %1330 = vmatmul.mubr.f32.gmra.mrb[0].mxu0 %v1162
    %v1331 = vpop.f32.mrb[0].mxu0
    %v1332 = vadd.f32 0.0, %v1331
    %v1333 = vpop.f32.mrb[0].mxu0
    %1334 = vdwg.mxu0
    %1335 = vmatprep.subr.mxu0 0.0
    %1336 = vmatpush1.msra.mxu0 %v71
    %1337 = vmatprep.subr.mxu0 0.0
    %1338 = vmatpush1.msra.mxu0 %v72
    %1339 = vmatprep.subr.mxu0 0.0
    %1340 = vmatpush1.msra.mxu0 %v73
    %1341 = vmatprep.subr.mxu0 0.0
    %1342 = vmatpush1.msra.mxu0 %v74
    %1343 = vmatprep.subr.mxu0 0.0
    %1344 = vmatpush1.msra.mxu0 %v75
    %1345 = vmatprep.subr.mxu0 0.0
    %1346 = vmatpush1.msra.mxu0 %v76
    %1347 = vmatprep.subr.mxu0 0.0
    %1348 = vmatpush1.msra.mxu0 %v77
    %1349 = vmatprep.subr.mxu0 0.0
    %1350 = vmatpush1.msra.mxu0 %v78
    %1351 = vmatprep.subr.mxu0 0.0
    %1352 = vmatpush1.msra.mxu0 %v79
    %1353 = vmatprep.subr.mxu0 0.0
    %1354 = vmatpush1.msra.mxu0 %v80
    %1355 = vmatprep.subr.mxu0 0.0
    %1356 = vmatpush1.msra.mxu0 %v81
    %1357 = vmatprep.subr.mxu0 0.0
    %1358 = vmatpush1.msra.mxu0 %v82
    %1359 = vmatprep.subr.mxu0 0.0
    %1360 = vmatpush1.msra.mxu0 %v83
    %1361 = vmatprep.subr.mxu0 0.0
    %1362 = vmatpush1.msra.mxu0 %v84
    %1363 = vmatprep.subr.mxu0 0.0
    %1364 = vmatpush1.msra.mxu0 %v85
    %1365 = vmatprep.subr.mxu0 0.0
    %1366 = vmatpush1.msra.mxu0 %v86
    %1367 = vmatprep.subr.mxu0 0.0
    %1368 = vmatpush1.msra.mxu0 %v87
    %1369 = vmatprep.subr.mxu0 0.0
    %1370 = vmatpush1.msra.mxu0 %v88
    %1371 = vmatprep.subr.mxu0 0.0
    %1372 = vmatpush1.msra.mxu0 %v89
    %1373 = vmatprep.subr.mxu0 0.0
    %1374 = vmatpush1.msra.mxu0 %v90
    %1375 = vmatprep.subr.mxu0 0.0
    %1376 = vmatpush1.msra.mxu0 %v91
    %1377 = vmatprep.subr.mxu0 0.0
    %1378 = vmatpush1.msra.mxu0 %v92
    %1379 = vmatprep.subr.mxu0 0.0
    %1380 = vmatpush1.msra.mxu0 %v93
    %1381 = vmatprep.subr.mxu0 0.0
    %1382 = vmatpush1.msra.mxu0 %v94
    %1383 = vmatprep.subr.mxu0 0.0
    %1384 = vmatpush1.msra.mxu0 %v95
    %1385 = vmatprep.subr.mxu0 0.0
    %1386 = vmatpush1.msra.mxu0 %v96
    %1387 = vmatprep.subr.mxu0 0.0
    %1388 = vmatpush1.msra.mxu0 %v97
    %1389 = vmatprep.subr.mxu0 0.0
    %1390 = vmatpush1.msra.mxu0 %v98
    %1391 = vmatprep.subr.mxu0 0.0
    %1392 = vmatpush1.msra.mxu0 %v99
    %1393 = vmatprep.subr.mxu0 0.0
    %1394 = vmatpush1.msra.mxu0 %v100
    %1395 = vmatprep.subr.mxu0 0.0
    %1396 = vmatpush1.msra.mxu0 %v101
    %1397 = vmatprep.subr.mxu0 0.0
    %1398 = vmatpush1.msra.mxu0 %v102
    %1399 = vmatprep.mubr.f32.mxu0 %v1235
    %1400 = vmatmul.mubr.f32.gmra.mrb[0].mxu0 %v1233
    %v1401 = vpop.f32.mrb[0].mxu0
    %v1402 = vadd.f32 %v1322, %v1401
    %v1403 = vpop.f32.mrb[0].mxu0
    %1404 = vmatprep.mubr.f32.mxu0 %v1241
    %1405 = vmatmul.mubr.f32.gmra.mrb[0].mxu0 %v1239
    %v1406 = vpop.f32.mrb[0].mxu0
    %v1407 = vadd.f32 %v1327, %v1406
    %v1408 = vpop.f32.mrb[0].mxu0
    %1409 = vmatprep.mubr.f32.mxu0 %v1247
    %1410 = vmatmul.mubr.f32.gmra.mrb[0].mxu0 %v1245
    %v1411 = vpop.f32.mrb[0].mxu0
    %v1412 = vadd.f32 %v1332, %v1411
    %v1413 = vpop.f32.mrb[0].mxu0
    %1414 = vdwg.mxu0
    %v1415 = vmul.f32 %v1150, %v1150
    %v1416 = vmul.f32 %v1152, %v1152
    %v1417 = vmul.f32 %v1233, %v1233
    %v1418 = vmul.f32 %v1235, %v1235
    %v1419 = vmul.f32 %v1156, %v1156
    %v1420 = vmul.f32 %v1158, %v1158
    %v1421 = vmul.f32 %v1239, %v1239
    %v1422 = vmul.f32 %v1241, %v1241
    %v1423 = vmul.f32 %v1162, %v1162
    %v1424 = vmul.f32 %v1164, %v1164
    %v1425 = vmul.f32 %v1245, %v1245
    %v1426 = vmul.f32 %v1247, %v1247
    %1427 = vmatprep.subr.mxu0 0.0
    %1428 = vmatpush1.msra.mxu0 %v39
    %1429 = vmatprep.subr.mxu0 0.0
    %1430 = vmatpush1.msra.mxu0 %v40
    %1431 = vmatprep.subr.mxu0 0.0
    %1432 = vmatpush1.msra.mxu0 %v41
    %1433 = vmatprep.subr.mxu0 0.0
    %1434 = vmatpush1.msra.mxu0 %v42
    %1435 = vmatprep.subr.mxu0 0.0
    %1436 = vmatpush1.msra.mxu0 %v43
    %1437 = vmatprep.subr.mxu0 0.0
    %1438 = vmatpush1.msra.mxu0 %v44
    %1439 = vmatprep.subr.mxu0 0.0
    %1440 = vmatpush1.msra.mxu0 %v45
    %1441 = vmatprep.subr.mxu0 0.0
    %1442 = vmatpush1.msra.mxu0 %v46
    %1443 = vmatprep.subr.mxu0 0.0
    %1444 = vmatpush1.msra.mxu0 %v47
    %1445 = vmatprep.subr.mxu0 0.0
    %1446 = vmatpush1.msra.mxu0 %v48
    %1447 = vmatprep.subr.mxu0 0.0
    %1448 = vmatpush1.msra.mxu0 %v49
    %1449 = vmatprep.subr.mxu0 0.0
    %1450 = vmatpush1.msra.mxu0 %v50
    %1451 = vmatprep.subr.mxu0 0.0
    %1452 = vmatpush1.msra.mxu0 %v51
    %1453 = vmatprep.subr.mxu0 0.0
    %1454 = vmatpush1.msra.mxu0 %v52
    %1455 = vmatprep.subr.mxu0 0.0
    %1456 = vmatpush1.msra.mxu0 %v53
    %1457 = vmatprep.subr.mxu0 0.0
    %1458 = vmatpush1.msra.mxu0 %v54
    %1459 = vmatprep.subr.mxu0 0.0
    %1460 = vmatpush1.msra.mxu0 %v55
    %1461 = vmatprep.subr.mxu0 0.0
    %1462 = vmatpush1.msra.mxu0 %v56
    %1463 = vmatprep.subr.mxu0 0.0
    %1464 = vmatpush1.msra.mxu0 %v57
    %1465 = vmatprep.subr.mxu0 0.0
    %1466 = vmatpush1.msra.mxu0 %v58
    %1467 = vmatprep.subr.mxu0 0.0
    %1468 = vmatpush1.msra.mxu0 %v59
    %1469 = vmatprep.subr.mxu0 0.0
    %1470 = vmatpush1.msra.mxu0 %v60
    %1471 = vmatprep.subr.mxu0 0.0
    %1472 = vmatpush1.msra.mxu0 %v61
    %1473 = vmatprep.subr.mxu0 0.0
    %1474 = vmatpush1.msra.mxu0 %v62
    %1475 = vmatprep.subr.mxu0 0.0
    %1476 = vmatpush1.msra.mxu0 %v63
    %1477 = vmatprep.subr.mxu0 0.0
    %1478 = vmatpush1.msra.mxu0 %v64
    %1479 = vmatprep.subr.mxu0 0.0
    %1480 = vmatpush1.msra.mxu0 %v65
    %1481 = vmatprep.subr.mxu0 0.0
    %1482 = vmatpush1.msra.mxu0 %v66
    %1483 = vmatprep.subr.mxu0 0.0
    %1484 = vmatpush1.msra.mxu0 %v67
    %1485 = vmatprep.subr.mxu0 0.0
    %1486 = vmatpush1.msra.mxu0 %v68
    %1487 = vmatprep.subr.mxu0 0.0
    %1488 = vmatpush1.msra.mxu0 %v69
    %1489 = vmatprep.subr.mxu0 0.0
    %1490 = vmatpush1.msra.mxu0 %v70
    %1491 = vmatprep.mubr.f32.mxu0 %v1416
    %1492 = vmatmul.mubr.f32.gmra.mrb[0].mxu0 %v1415
    %v1493 = vpop.f32.mrb[0].mxu0
    %v1494 = vadd.f32 0.0, %v1493
    %v1495 = vpop.f32.mrb[0].mxu0
    %1496 = vmatprep.mubr.f32.mxu0 %v1420
    %1497 = vmatmul.mubr.f32.gmra.mrb[0].mxu0 %v1419
    %v1498 = vpop.f32.mrb[0].mxu0
    %v1499 = vadd.f32 0.0, %v1498
    %v1500 = vpop.f32.mrb[0].mxu0
    %1501 = vmatprep.mubr.f32.mxu0 %v1424
    %1502 = vmatmul.mubr.f32.gmra.mrb[0].mxu0 %v1423
    %v1503 = vpop.f32.mrb[0].mxu0
    %v1504 = vadd.f32 0.0, %v1503
    %v1505 = vpop.f32.mrb[0].mxu0
    %1506 = vdwg.mxu0
    %1507 = vmatprep.subr.mxu0 0.0
    %1508 = vmatpush1.msra.mxu0 %v71
    %1509 = vmatprep.subr.mxu0 0.0
    %1510 = vmatpush1.msra.mxu0 %v72
    %1511 = vmatprep.subr.mxu0 0.0
    %1512 = vmatpush1.msra.mxu0 %v73
    %1513 = vmatprep.subr.mxu0 0.0
    %1514 = vmatpush1.msra.mxu0 %v74
    %1515 = vmatprep.subr.mxu0 0.0
    %1516 = vmatpush1.msra.mxu0 %v75
    %1517 = vmatprep.subr.mxu0 0.0
    %1518 = vmatpush1.msra.mxu0 %v76
    %1519 = vmatprep.subr.mxu0 0.0
    %1520 = vmatpush1.msra.mxu0 %v77
    %1521 = vmatprep.subr.mxu0 0.0
    %1522 = vmatpush1.msra.mxu0 %v78
    %1523 = vmatprep.subr.mxu0 0.0
    %1524 = vmatpush1.msra.mxu0 %v79
    %1525 = vmatprep.subr.mxu0 0.0
    %1526 = vmatpush1.msra.mxu0 %v80
    %1527 = vmatprep.subr.mxu0 0.0
    %1528 = vmatpush1.msra.mxu0 %v81
    %1529 = vmatprep.subr.mxu0 0.0
    %1530 = vmatpush1.msra.mxu0 %v82
    %1531 = vmatprep.subr.mxu0 0.0
    %1532 = vmatpush1.msra.mxu0 %v83
    %1533 = vmatprep.subr.mxu0 0.0
    %1534 = vmatpush1.msra.mxu0 %v84
    %1535 = vmatprep.subr.mxu0 0.0
    %1536 = vmatpush1.msra.mxu0 %v85
    %1537 = vmatprep.subr.mxu0 0.0
    %1538 = vmatpush1.msra.mxu0 %v86
    %1539 = vmatprep.subr.mxu0 0.0
    %1540 = vmatpush1.msra.mxu0 %v87
    %1541 = vmatprep.subr.mxu0 0.0
    %1542 = vmatpush1.msra.mxu0 %v88
    %1543 = vmatprep.subr.mxu0 0.0
    %1544 = vmatpush1.msra.mxu0 %v89
    %1545 = vmatprep.subr.mxu0 0.0
    %1546 = vmatpush1.msra.mxu0 %v90
    %1547 = vmatprep.subr.mxu0 0.0
    %1548 = vmatpush1.msra.mxu0 %v91
    %1549 = vmatprep.subr.mxu0 0.0
    %1550 = vmatpush1.msra.mxu0 %v92
    %1551 = vmatprep.subr.mxu0 0.0
    %1552 = vmatpush1.msra.mxu0 %v93
    %1553 = vmatprep.subr.mxu0 0.0
    %1554 = vmatpush1.msra.mxu0 %v94
    %1555 = vmatprep.subr.mxu0 0.0
    %1556 = vmatpush1.msra.mxu0 %v95
    %1557 = vmatprep.subr.mxu0 0.0
    %1558 = vmatpush1.msra.mxu0 %v96
    %1559 = vmatprep.subr.mxu0 0.0
    %1560 = vmatpush1.msra.mxu0 %v97
    %1561 = vmatprep.subr.mxu0 0.0
    %1562 = vmatpush1.msra.mxu0 %v98
    %1563 = vmatprep.subr.mxu0 0.0
    %1564 = vmatpush1.msra.mxu0 %v99
    %1565 = vmatprep.subr.mxu0 0.0
    %1566 = vmatpush1.msra.mxu0 %v100
    %1567 = vmatprep.subr.mxu0 0.0
    %1568 = vmatpush1.msra.mxu0 %v101
    %1569 = vmatprep.subr.mxu0 0.0
    %1570 = vmatpush1.msra.mxu0 %v102
    %1571 = vmatprep.mubr.f32.mxu0 %v1418
    %1572 = vmatmul.mubr.f32.gmra.mrb[0].mxu0 %v1417
    %v1573 = vpop.f32.mrb[0].mxu0
    %v1574 = vadd.f32 %v1494, %v1573
    %v1575 = vpop.f32.mrb[0].mxu0
    %1576 = vmatprep.mubr.f32.mxu0 %v1422
    %1577 = vmatmul.mubr.f32.gmra.mrb[0].mxu0 %v1421
    %v1578 = vpop.f32.mrb[0].mxu0
    %v1579 = vadd.f32 %v1499, %v1578
    %v1580 = vpop.f32.mrb[0].mxu0
    %1581 = vmatprep.mubr.f32.mxu0 %v1426
    %1582 = vmatmul.mubr.f32.gmra.mrb[0].mxu0 %v1425
    %v1583 = vpop.f32.mrb[0].mxu0
    %v1584 = vadd.f32 %v1504, %v1583
    %v1585 = vpop.f32.mrb[0].mxu0
    %1586 = vdwg.mxu0
    %v1587 = vmul.f32 %v1402, %v1402
    %v1588 = vmul.f32 %v1407, %v1407
    %v1589 = vmul.f32 %v1412, %v1412
    %v1590 = vsub.f32 %v1574, %v1587
    %v1591 = vsub.f32 %v1579, %v1588
    %v1592 = vsub.f32 %v1584, %v1589
    %v1593 = vmax.f32 %v1590, 0.0
    %v1594 = vmax.f32 %v1591, 0.0
    %v1595 = vmax.f32 %v1592, 0.0
    %v1596 = vadd.f32 %v1593, 1e-05
    %v1597 = vadd.f32 %v1594, 1e-05
    %v1598 = vadd.f32 %v1595, 1e-05
    %v1599 = vrsqrt.pop %v1596
    %v1600 = vrsqrt.pop %v1597
    %v1601 = vrsqrt.pop %v1598
    %v1602 = vmul.f32 %v1249, %v1599
    %v1603 = vmul.f32 %v1250, %v1600
    %v1604 = vmul.f32 %v1251, %v1601
    %v1605 = vmul.f32 %v1402, %v1602
    %v1606 = vmul.f32 %v1407, %v1603
    %v1607 = vmul.f32 %v1412, %v1604
    %v1608 = vsub.f32 %v1252, %v1605
    %v1609 = vsub.f32 %v1253, %v1606
    %v1610 = vsub.f32 %v1254, %v1607
    %1612 = vset.pattern.permute.xlu0 0
    %1613 = vperm.xlu0 %1612, %v1602
    %v1614 = vpop.permute.xlu0 %1613
    %1617 = vset.pattern.permute.xlu0 0
    %1618 = vperm.xlu0 %1617, %v1603
    %v1619 = vpop.permute.xlu0 %1618
    %1622 = vset.pattern.permute.xlu0 0
    %1623 = vperm.xlu0 %1622, %v1604
    %v1624 = vpop.permute.xlu0 %1623
    %v1626 = vmul.f32 %v1150, %v1614
    %v1627 = vmul.f32 %v1152, %v1614
    %v1628 = vmul.f32 %v1233, %v1614
    %v1629 = vmul.f32 %v1235, %v1614
    %v1630 = vmul.f32 %v1156, %v1619
    %v1631 = vmul.f32 %v1158, %v1619
    %v1632 = vmul.f32 %v1239, %v1619
    %v1633 = vmul.f32 %v1241, %v1619
    %v1634 = vmul.f32 %v1162, %v1624
    %v1635 = vmul.f32 %v1164, %v1624
    %v1636 = vmul.f32 %v1245, %v1624
    %v1637 = vmul.f32 %v1247, %v1624
    %1639 = vset.pattern.permute.xlu0 0
    %1640 = vperm.xlu0 %1639, %v1608
    %v1641 = vpop.permute.xlu0 %1640
    %1644 = vset.pattern.permute.xlu0 0
    %1645 = vperm.xlu0 %1644, %v1609
    %v1646 = vpop.permute.xlu0 %1645
    %1649 = vset.pattern.permute.xlu0 0
    %1650 = vperm.xlu0 %1649, %v1610
    %v1651 = vpop.permute.xlu0 %1650
    %v1653 = vadd.f32 %v1626, %v1641
    %v1654 = vadd.f32 %v1627, %v1641
    %v1655 = vadd.f32 %v1628, %v1641
    %v1656 = vadd.f32 %v1629, %v1641
    %v1657 = vadd.f32 %v1630, %v1646
    %v1658 = vadd.f32 %v1631, %v1646
    %v1659 = vadd.f32 %v1632, %v1646
    %v1660 = vadd.f32 %v1633, %v1646
    %v1661 = vadd.f32 %v1634, %v1651
    %v1662 = vadd.f32 %v1635, %v1651
    %v1663 = vadd.f32 %v1636, %v1651
    %v1664 = vadd.f32 %v1637, %v1651
    %v1665 = vadd.f32 %v1653, %v103
    %v1666 = vadd.f32 %v1654, %v104
    %v1667 = vadd.f32 %v1657, %v105
    %v1668 = vadd.f32 %v1658, %v106
    %v1669 = vadd.f32 %v1661, %v107
    %v1670 = vadd.f32 %v1662, %v108
    %1671 = vst [vmem:[#allocation2] sm:$0xff] %v1665
    %1672 = vst [vmem:[#allocation2 + $0x8] sm:$0xff] %v1666
    %1673 = vst [vmem:[#allocation2 + $0x10] sm:$0xff] %v1667
    %1674 = vst [vmem:[#allocation2 + $0x18] sm:$0xff] %v1668
    %1675 = vst [vmem:[#allocation2 + $0x20] sm:$0xff] %v1669
    %1676 = vst [vmem:[#allocation2 + $0x28] sm:$0xff] %v1670
    %v1677 = vld [vmem:[%s109] sm:$0xff]
    %v1678 = vld [vmem:[%s109 + $0x8] sm:$0xff]
    %v1679 = vld [vmem:[%s109 + $0x10] sm:$0xff]
    %v1680 = vld [vmem:[%s109 + $0x18] sm:$0xff]
    %v1681 = vld [vmem:[%s109 + $0x20] sm:$0xff]
    %v1682 = vld [vmem:[%s109 + $0x28] sm:$0xff]
    %v1683 = vadd.f32 %v1655, %v1677
    %v1684 = vadd.f32 %v1656, %v1678
    %v1685 = vadd.f32 %v1659, %v1679
    %v1686 = vadd.f32 %v1660, %v1680
    %v1687 = vadd.f32 %v1663, %v1681
    %v1688 = vadd.f32 %v1664, %v1682
    %s1689 = scalar_lea.vmem [#allocation2], 48
    %1690 = vst [vmem:[%s1689] sm:$0xff] %v1683
    %1691 = vst [vmem:[%s1689 + $0x8] sm:$0xff] %v1684
    %1692 = vst [vmem:[%s1689 + $0x10] sm:$0xff] %v1685
    %1693 = vst [vmem:[%s1689 + $0x18] sm:$0xff] %v1686
    %1694 = vst [vmem:[%s1689 + $0x20] sm:$0xff] %v1687
    %1695 = vst [vmem:[%s1689 + $0x28] sm:$0xff] %v1688
    // Predicated region
    $region46: #{tpu_custom_call.1} parent=1 // pred_check
      _
    $region47: #{tpu_custom_call.1} parent=1 // pred_check_branch
      %1697 = sbr.rel (0) target = $region49
    $region48: #{tpu_custom_call.1} parent=1 // pred_region
      %s1699 = ssub.s32 1536, 1536
      %1700 = vsyncadd [#allocation3], %s1699
      %s1701 = sshll.u32 [#allocation2], 4
      %s1702 = int_to_ptr.vmem [resolvable:$true] %s1701
      %1707 = dma.vmem_to_hbm [thread:$0]  %s1702, 1536, %s11, [#allocation3], 256, 256, 16
    $region49: #{tpu_custom_call.1} parent=1 // pred_fallthru
      _
    // Predicated region
    $region50: #{tpu_custom_call.1} parent=1 // pred_check
      _
    $region51: #{tpu_custom_call.1} parent=1 // pred_check_branch
      %1709 = sbr.rel (0) target = $region53
    $region52: #{tpu_custom_call.1} parent=1 // pred_region
      %1710 = dma.done [#allocation3], 1536
    $region53: #{tpu_custom_call.1} parent=1 // pred_fallthru
      _
    %1711 = vsyncpa [#allocation3], 1

</llo_original>
